<compile_context>
chip_gen: v6e
topology: v6e:2x2x1
jax: 0.10.0
libtpu: 0.0.40
codegen_flags: <defaults>
</compile_context>

<pallas_src>
import jax
import jax.numpy as jnp
from jax.experimental import pallas as pl
from jax.experimental.pallas import tpu as pltpu

# Feature / lane padding (kept as small as BlockSpec rules allow).
K1P, C1P = 32, 16          # conv1: K = 1*5*5 = 25 -> 32,  Cout = 10 -> 16
K2P, C2P = 256, 32         # conv2: K = 10*5*5 = 250 -> 256, Cout = 20 -> 32
HIDP, OUTP = 64, 16        # fc1 hidden 50 -> 64, fc2 out 10 -> 16
VMEM_LIMIT = 48 * 1024 * 1024   # explicit; sized for v7x 64 MiB/TC w/ headroom


# ----------------------------------------------------------------------------
# Pallas kernels
# ----------------------------------------------------------------------------
def conv_pool_kernel(cols_ref, w_ref, b_ref, o_ref):
    """Fused conv (im2col matmul) + bias + ReLU + 2x2 maxpool.

    cols_ref: (4, TM, Kp) bf16 - 4 pool-window quadrants of im2col patches
    w_ref:    (Kp, CP)    bf16 - weight matrix, zero-padded (VMEM-resident)
    b_ref:    (1, CP)     f32  - bias, zero-padded (resident)
    o_ref:    (TM, CP)    bf16 - pooled + ReLU'd output, channels on lanes
    """
    nq, tm, kp = cols_ref.shape
    # Single long matmul over all 4 quadrants (keeps the MXU fed); the
    # leading-dim merge is layout-preserving (TM is a multiple of 16).
    cols = cols_ref[...].reshape(nq * tm, kp)
    z = jnp.dot(cols, w_ref[...], preferred_element_type=jnp.float32)
    # maxpool(relu(conv + b)) == relu(max(conv) + b): per-channel bias, ReLU
    # monotone.  Quadrant max = sublane-slice max on the VPU.
    m = jnp.maximum(jnp.maximum(z[0 * tm:1 * tm], z[1 * tm:2 * tm]),
                    jnp.maximum(z[2 * tm:3 * tm], z[3 * tm:4 * tm]))
    o_ref[...] = jnp.maximum(m + b_ref[...], 0.0).astype(o_ref.dtype)


def fc_fused_kernel(x_ref, w1_ref, b1_ref, w2_ref, b2_ref, o_ref):
    """Fused fc1 + bias + ReLU + fc2 + bias + ReLU (all weights resident)."""
    h = jnp.dot(x_ref[...], w1_ref[...], preferred_element_type=jnp.float32)
    h = jnp.maximum(h + b1_ref[...], 0.0)
    z = jnp.dot(h.astype(jnp.bfloat16), w2_ref[...],
                preferred_element_type=jnp.float32)
    o_ref[...] = jnp.maximum(z + b2_ref[...], 0.0)


# ----------------------------------------------------------------------------
# Pallas wrappers
# ----------------------------------------------------------------------------
def conv_pool_fused(cols, w, b, rows_per_image, batch_tile):
    """cols: (4, M, Kp) bf16, w: (Kp, CP) bf16, b: (1, CP) f32 -> (M, CP) bf16."""
    _, M, Kp = cols.shape
    CP = w.shape[1]
    TM = rows_per_image * batch_tile          # rows_per_image is a mult. of 16
    grid = (pl.cdiv(M, TM),)
    return pl.pallas_call(
        conv_pool_kernel,
        out_shape=jax.ShapeDtypeStruct((M, CP), jnp.bfloat16),
        grid=grid,
        in_specs=[
            pl.BlockSpec((4, TM, Kp), lambda i: (0, i, 0)),   # tiled over M
            pl.BlockSpec((Kp, CP), lambda i: (0, 0)),         # resident
            pl.BlockSpec((1, CP), lambda i: (0, 0)),          # resident
        ],
        out_specs=pl.BlockSpec((TM, CP), lambda i: (i, 0)),
        compiler_params=pltpu.CompilerParams(
            dimension_semantics=("parallel",),
            vmem_limit_bytes=VMEM_LIMIT),
    )(cols, w, b)


def fc_fused(x, w1, b1, w2, b2, tm):
    """x: (N, K1) bf16 -> (N, OUTP) f32 = relu(relu(x @ w1 + b1) @ w2 + b2)."""
    M, K1 = x.shape
    grid = (pl.cdiv(M, tm),)
    return pl.pallas_call(
        fc_fused_kernel,
        out_shape=jax.ShapeDtypeStruct((M, OUTP), jnp.float32),
        grid=grid,
        in_specs=[
            pl.BlockSpec((tm, K1), lambda i: (i, 0)),
            pl.BlockSpec((K1, HIDP), lambda i: (0, 0)),
            pl.BlockSpec((1, HIDP), lambda i: (0, 0)),
            pl.BlockSpec((HIDP, OUTP), lambda i: (0, 0)),
            pl.BlockSpec((1, OUTP), lambda i: (0, 0)),
        ],
        out_specs=pl.BlockSpec((tm, OUTP), lambda i: (i, 0)),
        compiler_params=pltpu.CompilerParams(
            dimension_semantics=("parallel",),
            vmem_limit_bytes=VMEM_LIMIT),
    )(x, w1, b1, w2, b2)


# ----------------------------------------------------------------------------
# XLA glue: im2col with the 2x2-pool quadrants pre-grouped (bf16)
# ----------------------------------------------------------------------------
def im2col_pool_quadrants(x_nhwc, kh, kw, k_pad, c_take=None):
    """x_nhwc: (N, H, W, C) -> (4, N*(Ho//2)*(Wo//2), k_pad) bf16 quadrants.

    Patch feature order is c*kh*kw + di*kw + dj (matches the PyTorch
    weight.reshape(Cout, Cin*kh*kw) flatten order).  `c_take` folds the
    valid-channel slice into the gather producer (no separate HBM pass)."""
    if c_take is not None:
        x_nhwc = x_nhwc[..., :c_take]
    x_nhwc = x_nhwc.astype(jnp.bfloat16)
    N, H, W, C = x_nhwc.shape
    Ho, Wo = H - kh + 1, W - kw + 1
    taps = [x_nhwc[:, di:di + Ho, dj:dj + Wo, :]
            for di in range(kh) for dj in range(kw)]
    win = jnp.stack(taps, axis=-1)                 # (N, Ho, Wo, C, kh*kw)
    win = win.reshape(N, Ho, Wo, C * kh * kw)      # feature = c*kh*kw + t
    quads = []
    for a in range(2):
        for b in range(2):
            q = win[:, a::2, b::2, :]              # (N, Ho//2, Wo//2, K)
            quads.append(q.reshape(N * (Ho // 2) * (Wo // 2), C * kh * kw))
    cols = jnp.stack(quads, axis=0)                # (4, M, K)
    K = C * kh * kw
    if k_pad > K:
        cols = jnp.pad(cols, ((0, 0), (0, 0), (0, k_pad - K)))
    return cols


# ----------------------------------------------------------------------------
# Parameters
# ----------------------------------------------------------------------------
def init_params(key):
    """PyTorch-shaped params, uniform(-1/sqrt(fan_in), 1/sqrt(fan_in))."""
    ks = jax.random.split(key, 8)

    def u(k, shape, fan_in):
        bound = 1.0 / jnp.sqrt(jnp.float32(fan_in))
        return jax.random.uniform(k, shape, jnp.float32, -bound, bound)

    return {
        "conv1_w": u(ks[0], (10, 1, 5, 5), 1 * 5 * 5),
        "conv1_b": u(ks[1], (10,), 1 * 5 * 5),
        "conv2_w": u(ks[2], (20, 10, 5, 5), 10 * 5 * 5),
        "conv2_b": u(ks[3], (20,), 10 * 5 * 5),
        "fc1_w":   u(ks[4], (50, 320), 320),
        "fc1_b":   u(ks[5], (50,), 320),
        "fc2_w":   u(ks[6], (10, 50), 50),
        "fc2_b":   u(ks[7], (10,), 50),
    }


def prepare_params(params):
    """One-time weight prep: transpose, pad (zeros stay exactly zero so padded
    lanes carry exact zeros end-to-end), cast matmul weights to bf16, and fold
    the torch NCHW-flatten permutation into fc1's weight."""
    def pad_to(a, shape):
        return jnp.pad(a, [(0, s - d) for d, s in zip(a.shape, shape)])

    bf = jnp.bfloat16
    w1 = params["conv1_w"].reshape(10, 25).T                  # (25, 10)
    w2 = params["conv2_w"].reshape(20, 250).T                 # (250, 20)

    # fc1: torch feature index = c*16 + h*4 + w; ours (after conv2 kernel) is
    # (h*4 + w)*C2P + c with channels padded to C2P lanes.
    f1 = params["fc1_w"].reshape(50, 20, 4, 4)                # (o, c, h, w)
    f1 = jnp.transpose(f1, (2, 3, 1, 0))                      # (h, w, c, o)
    f1 = jnp.pad(f1, ((0, 0), (0, 0), (0, C2P - 20), (0, HIDP - 50)))
    f1 = f1.reshape(16 * C2P, HIDP)                           # (512, 64)

    f2 = params["fc2_w"].T                                    # (50, 10)

    return {
        "conv1_w": pad_to(w1, (K1P, C1P)).astype(bf),
        "conv1_b": pad_to(params["conv1_b"].reshape(1, 10), (1, C1P)),
        "conv2_w": pad_to(w2, (K2P, C2P)).astype(bf),
        "conv2_b": pad_to(params["conv2_b"].reshape(1, 20), (1, C2P)),
        "fc1_w": f1.astype(bf),
        "fc1_b": pad_to(params["fc1_b"].reshape(1, 50), (1, HIDP)),
        "fc2_w": pad_to(f2, (HIDP, OUTP)).astype(bf),
        "fc2_b": pad_to(params["fc2_b"].reshape(1, 10), (1, OUTP)),
    }


# ----------------------------------------------------------------------------
# Forward pass
# ----------------------------------------------------------------------------
def mnist_convnet_forward(prepared, x):
    """x: (N, 1, 28, 28) f32 NCHW -> (N, 10) f32 (ReLU'd, as in the spec)."""
    N = x.shape[0]
    # Tile choices (generation-aware caps from the review):
    #   conv1: cap 32 images/step (TM=4608) -- its K=32 cols buffer lane-pads
    #          4x in VMEM, so this stays well under v7x's 64 MiB/TC.
    #   conv2: decoupled, much larger (cap 128 images/step -> TM=2048 rows).
    #   fc:    up to 512 rows/step.
    # N//2 keeps grid >= 2 whenever N >= 2 so "parallel" can shard across
    # both v7x TensorCores (no-op on 1-TC v5e/v6e).
    tb1 = max(1, min(32, N // 2))
    tb2 = max(1, min(128, N // 2))
    tm_fc = N if N <= 512 else 512

    x_nhwc = jnp.transpose(x, (0, 2, 3, 1))                      # (N, 28, 28, 1)

    # conv1 + ReLU + pool1
    cols1 = im2col_pool_quadrants(x_nhwc, 5, 5, K1P)             # (4, N*144, 32) bf16
    p1 = conv_pool_fused(cols1, prepared["conv1_w"], prepared["conv1_b"],
                         rows_per_image=144, batch_tile=tb1)     # (N*144, 16) bf16
    a1 = p1.reshape(N, 12, 12, C1P)                              # NHWC

    # conv2 + ReLU + pool2 (valid-channel slice folded into the im2col producer)
    cols2 = im2col_pool_quadrants(a1, 5, 5, K2P, c_take=10)      # (4, N*16, 256) bf16
    p2 = conv_pool_fused(cols2, prepared["conv2_w"], prepared["conv2_b"],
                         rows_per_image=16, batch_tile=tb2)      # (N*16, 32) bf16

    # flatten (pure row-major reshape; torch NCHW order lives in fc1's weights)
    feats = p2.reshape(N, 16 * C2P)                              # (N, 512)

    # fc1 + ReLU + fc2 + ReLU
    out = fc_fused(feats, prepared["fc1_w"], prepared["fc1_b"],
                   prepared["fc2_w"], prepared["fc2_b"], tm_fc)  # (N, 16) f32
    return out[:, :10]


# ----------------------------------------------------------------------------
# Pure-JAX reference (for correctness check only)
# ----------------------------------------------------------------------------
def reference_forward(params, x):
    def conv(t, w, b):
        y = jax.lax.conv_general_dilated(
            t, w, (1, 1), "VALID",
            dimension_numbers=("NCHW", "OIHW", "NCHW"))
        return y + b.reshape(1, -1, 1, 1)

    def pool(t):
        n, c, h, w = t.shape
        return t.reshape(n, c, h // 2, 2, w // 2, 2).max(axis=(3, 5))

    t = pool(jax.nn.relu(conv(x, params["conv1_w"], params["conv1_b"])))
    t = pool(jax.nn.relu(conv(t, params["conv2_w"], params["conv2_b"])))
    t = t.reshape(t.shape[0], -1)
    t = jax.nn.relu(t @ params["fc1_w"].T + params["fc1_b"])
    t = jax.nn.relu(t @ params["fc2_w"].T + params["fc2_b"])
    return t


if __name__ == "__main__":
    key = jax.random.PRNGKey(0)
    pkey, xkey = jax.random.split(key)
    params = init_params(pkey)
    # 28x28 input is required by the module (fc1 expects 320 = 20*4*4 features).
    x = jax.random.normal(xkey, (2, 1, 28, 28), dtype=jnp.float32)

    prepared = prepare_params(params)          # one-time weight prep
    fwd = jax.jit(mnist_convnet_forward)
    out = jax.block_until_ready(fwd(prepared, x))
    assert out.shape == (2, 10) and out.dtype == jnp.float32

    ref = jax.block_until_ready(jax.jit(reference_forward)(params, x))
    err = float(jnp.max(jnp.abs(out - ref)))
    assert err < 5e-2, f"max abs error vs reference: {err}"
    print("KERNEL_OK")
</pallas_src>

<mosaic_0001>
module attributes {stable_mosaic.version = 11 : i64} {
  func.func @conv_pool_kernel(%arg0: i32, %arg1: memref<4x144x32xbf16, #tpu.memory_space<vmem>>, %arg2: memref<32x16xbf16, #tpu.memory_space<vmem>>, %arg3: memref<1x16xf32, #tpu.memory_space<vmem>>, %arg4: memref<144x16xbf16, #tpu.memory_space<vmem>>) attributes {dimension_semantics = [#tpu.dimension_semantics<parallel>], iteration_bounds = array<i64: 2>, scalar_prefetch = 0 : i64, scratch_operands = 0 : i64, tpu.core_type = #tpu.core_type<tc>, window_params = [{transform_indices = @transform_0, window_bounds = array<i64: 4, 144, 32>}, {pipeline_mode = #tpu.pipeline_mode<synchronous>, transform_indices = @transform_1, window_bounds = array<i64: 32, 16>}, {pipeline_mode = #tpu.pipeline_mode<synchronous>, transform_indices = @transform_2, window_bounds = array<i64: 1, 16>}, {transform_indices = @transform_3, window_bounds = array<i64: 144, 16>}]} {
    %c0 = arith.constant 0 : index
    %c0_0 = arith.constant 0 : index
    %c0_1 = arith.constant 0 : index
    %0 = vector.load %arg1[%c0, %c0_0, %c0_1] : memref<4x144x32xbf16, #tpu.memory_space<vmem>>, vector<4x144x32xbf16>
    %1 = vector.shape_cast %0 : vector<4x144x32xbf16> to vector<576x32xbf16>
    %c0_2 = arith.constant 0 : index
    %c0_3 = arith.constant 0 : index
    %2 = vector.load %arg2[%c0_2, %c0_3] : memref<32x16xbf16, #tpu.memory_space<vmem>>, vector<32x16xbf16>
    %cst = arith.constant dense<0.000000e+00> : vector<576x16xf32>
    %3 = tpu.matmul %1, %2, %cst {dimension_numbers = #tpu.dot_dimension_numbers<[1], [0], [0], [1], [0, 0, 1, 1], [], []>} : vector<576x32xbf16>, vector<32x16xbf16>, vector<576x16xf32> -> vector<576x16xf32>
    %4 = vector.extract_strided_slice %3 {offsets = [0, 0], sizes = [144, 16], strides = [1, 1]} : vector<576x16xf32> to vector<144x16xf32>
    %5 = vector.extract_strided_slice %3 {offsets = [144, 0], sizes = [144, 16], strides = [1, 1]} : vector<576x16xf32> to vector<144x16xf32>
    %6 = arith.maximumf %4, %5 : vector<144x16xf32>
    %7 = vector.extract_strided_slice %3 {offsets = [288, 0], sizes = [144, 16], strides = [1, 1]} : vector<576x16xf32> to vector<144x16xf32>
    %8 = vector.extract_strided_slice %3 {offsets = [432, 0], sizes = [144, 16], strides = [1, 1]} : vector<576x16xf32> to vector<144x16xf32>
    %9 = arith.maximumf %7, %8 : vector<144x16xf32>
    %10 = arith.maximumf %6, %9 : vector<144x16xf32>
    %c0_4 = arith.constant 0 : index
    %c0_5 = arith.constant 0 : index
    %11 = vector.load %arg3[%c0_4, %c0_5] : memref<1x16xf32, #tpu.memory_space<vmem>>, vector<1x16xf32>
    %12 = vector.broadcast %11 : vector<1x16xf32> to vector<144x16xf32>
    %13 = arith.addf %10, %12 : vector<144x16xf32>
    %cst_6 = arith.constant 0.000000e+00 : f32
    %14 = vector.broadcast %cst_6 : f32 to vector<144x16xf32>
    %15 = arith.maximumf %13, %14 : vector<144x16xf32>
    %16 = arith.truncf %15 : vector<144x16xf32> to vector<144x16xbf16>
    %c0_7 = arith.constant 0 : index
    %c0_8 = arith.constant 0 : index
    %17 = vector.load %arg4[%c0_7, %c0_8] : memref<144x16xbf16, #tpu.memory_space<vmem>>, vector<144x16xbf16>
    tpu.vector_store %arg4[%c0_7, %c0_8], %16 {strides = array<i32>} : memref<144x16xbf16, #tpu.memory_space<vmem>>, vector<144x16xbf16>,
    return
  }
  func.func @transform_0(%arg0: i32) -> (i32, i32, i32) {
    %c0_i32 = arith.constant 0 : i32
    %c0_i32_0 = arith.constant 0 : i32
    %c0_i32_1 = arith.constant 0 : i32
    return %c0_i32, %arg0, %c0_i32_0 : i32, i32, i32
  }
  func.func @transform_1(%arg0: i32) -> (i32, i32) {
    %c0_i32 = arith.constant 0 : i32
    %c0_i32_0 = arith.constant 0 : i32
    %c0_i32_1 = arith.constant 0 : i32
    return %c0_i32, %c0_i32_0 : i32, i32
  }
  func.func @transform_2(%arg0: i32) -> (i32, i32) {
    %c0_i32 = arith.constant 0 : i32
    %c0_i32_0 = arith.constant 0 : i32
    %c0_i32_1 = arith.constant 0 : i32
    return %c0_i32, %c0_i32_0 : i32, i32
  }
  func.func @transform_3(%arg0: i32) -> (i32, i32) {
    %c0_i32 = arith.constant 0 : i32
    %c0_i32_0 = arith.constant 0 : i32
    return %arg0, %c0_i32 : i32, i32
  }
}

module attributes {stable_mosaic.version = 11 : i64} {
  func.func @conv_pool_kernel(%arg0: i32, %arg1: memref<4x16x256xbf16, #tpu.memory_space<vmem>>, %arg2: memref<256x32xbf16, #tpu.memory_space<vmem>>, %arg3: memref<1x32xf32, #tpu.memory_space<vmem>>, %arg4: memref<16x32xbf16, #tpu.memory_space<vmem>>) attributes {dimension_semantics = [#tpu.dimension_semantics<parallel>], iteration_bounds = array<i64: 2>, scalar_prefetch = 0 : i64, scratch_operands = 0 : i64, tpu.core_type = #tpu.core_type<tc>, window_params = [{transform_indices = @transform_0, window_bounds = array<i64: 4, 16, 256>}, {pipeline_mode = #tpu.pipeline_mode<synchronous>, transform_indices = @transform_1, window_bounds = array<i64: 256, 32>}, {pipeline_mode = #tpu.pipeline_mode<synchronous>, transform_indices = @transform_2, window_bounds = array<i64: 1, 32>}, {transform_indices = @transform_3, window_bounds = array<i64: 16, 32>}]} {
    %c0 = arith.constant 0 : index
    %c0_0 = arith.constant 0 : index
    %c0_1 = arith.constant 0 : index
    %0 = vector.load %arg1[%c0, %c0_0, %c0_1] : memref<4x16x256xbf16, #tpu.memory_space<vmem>>, vector<4x16x256xbf16>
    %1 = vector.shape_cast %0 : vector<4x16x256xbf16> to vector<64x256xbf16>
    %c0_2 = arith.constant 0 : index
    %c0_3 = arith.constant 0 : index
    %2 = vector.load %arg2[%c0_2, %c0_3] : memref<256x32xbf16, #tpu.memory_space<vmem>>, vector<256x32xbf16>
    %cst = arith.constant dense<0.000000e+00> : vector<64x32xf32>
    %3 = tpu.matmul %1, %2, %cst {dimension_numbers = #tpu.dot_dimension_numbers<[1], [0], [0], [1], [0, 0, 1, 1], [], []>} : vector<64x256xbf16>, vector<256x32xbf16>, vector<64x32xf32> -> vector<64x32xf32>
    %4 = vector.extract_strided_slice %3 {offsets = [0, 0], sizes = [16, 32], strides = [1, 1]} : vector<64x32xf32> to vector<16x32xf32>
    %5 = vector.extract_strided_slice %3 {offsets = [16, 0], sizes = [16, 32], strides = [1, 1]} : vector<64x32xf32> to vector<16x32xf32>
    %6 = arith.maximumf %4, %5 : vector<16x32xf32>
    %7 = vector.extract_strided_slice %3 {offsets = [32, 0], sizes = [16, 32], strides = [1, 1]} : vector<64x32xf32> to vector<16x32xf32>
    %8 = vector.extract_strided_slice %3 {offsets = [48, 0], sizes = [16, 32], strides = [1, 1]} : vector<64x32xf32> to vector<16x32xf32>
    %9 = arith.maximumf %7, %8 : vector<16x32xf32>
    %10 = arith.maximumf %6, %9 : vector<16x32xf32>
    %c0_4 = arith.constant 0 : index
    %c0_5 = arith.constant 0 : index
    %11 = vector.load %arg3[%c0_4, %c0_5] : memref<1x32xf32, #tpu.memory_space<vmem>>, vector<1x32xf32>
    %12 = vector.broadcast %11 : vector<1x32xf32> to vector<16x32xf32>
    %13 = arith.addf %10, %12 : vector<16x32xf32>
    %cst_6 = arith.constant 0.000000e+00 : f32
    %14 = vector.broadcast %cst_6 : f32 to vector<16x32xf32>
    %15 = arith.maximumf %13, %14 : vector<16x32xf32>
    %16 = arith.truncf %15 : vector<16x32xf32> to vector<16x32xbf16>
    %c0_7 = arith.constant 0 : index
    %c0_8 = arith.constant 0 : index
    %17 = vector.load %arg4[%c0_7, %c0_8] : memref<16x32xbf16, #tpu.memory_space<vmem>>, vector<16x32xbf16>
    tpu.vector_store %arg4[%c0_7, %c0_8], %16 {strides = array<i32>} : memref<16x32xbf16, #tpu.memory_space<vmem>>, vector<16x32xbf16>,
    return
  }
  func.func @transform_0(%arg0: i32) -> (i32, i32, i32) {
    %c0_i32 = arith.constant 0 : i32
    %c0_i32_0 = arith.constant 0 : i32
    %c0_i32_1 = arith.constant 0 : i32
    return %c0_i32, %arg0, %c0_i32_0 : i32, i32, i32
  }
  func.func @transform_1(%arg0: i32) -> (i32, i32) {
    %c0_i32 = arith.constant 0 : i32
    %c0_i32_0 = arith.constant 0 : i32
    %c0_i32_1 = arith.constant 0 : i32
    return %c0_i32, %c0_i32_0 : i32, i32
  }
  func.func @transform_2(%arg0: i32) -> (i32, i32) {
    %c0_i32 = arith.constant 0 : i32
    %c0_i32_0 = arith.constant 0 : i32
    %c0_i32_1 = arith.constant 0 : i32
    return %c0_i32, %c0_i32_0 : i32, i32
  }
  func.func @transform_3(%arg0: i32) -> (i32, i32) {
    %c0_i32 = arith.constant 0 : i32
    %c0_i32_0 = arith.constant 0 : i32
    return %arg0, %c0_i32 : i32, i32
  }
}

module attributes {stable_mosaic.version = 11 : i64} {
  func.func @fc_fused_kernel(%arg0: i32, %arg1: memref<2x512xbf16, #tpu.memory_space<vmem>>, %arg2: memref<512x64xbf16, #tpu.memory_space<vmem>>, %arg3: memref<1x64xf32, #tpu.memory_space<vmem>>, %arg4: memref<64x16xbf16, #tpu.memory_space<vmem>>, %arg5: memref<1x16xf32, #tpu.memory_space<vmem>>, %arg6: memref<2x16xf32, #tpu.memory_space<vmem>>) attributes {dimension_semantics = [#tpu.dimension_semantics<parallel>], iteration_bounds = array<i64: 1>, scalar_prefetch = 0 : i64, scratch_operands = 0 : i64, tpu.core_type = #tpu.core_type<tc>, window_params = [{transform_indices = @transform_0, window_bounds = array<i64: 2, 512>}, {pipeline_mode = #tpu.pipeline_mode<synchronous>, transform_indices = @transform_1, window_bounds = array<i64: 512, 64>}, {pipeline_mode = #tpu.pipeline_mode<synchronous>, transform_indices = @transform_2, window_bounds = array<i64: 1, 64>}, {pipeline_mode = #tpu.pipeline_mode<synchronous>, transform_indices = @transform_3, window_bounds = array<i64: 64, 16>}, {pipeline_mode = #tpu.pipeline_mode<synchronous>, transform_indices = @transform_4, window_bounds = array<i64: 1, 16>}, {transform_indices = @transform_5, window_bounds = array<i64: 2, 16>}]} {
    %c0 = arith.constant 0 : index
    %c0_0 = arith.constant 0 : index
    %0 = vector.load %arg1[%c0, %c0_0] : memref<2x512xbf16, #tpu.memory_space<vmem>>, vector<2x512xbf16>
    %c0_1 = arith.constant 0 : index
    %c0_2 = arith.constant 0 : index
    %1 = vector.load %arg2[%c0_1, %c0_2] : memref<512x64xbf16, #tpu.memory_space<vmem>>, vector<512x64xbf16>
    %cst = arith.constant dense<0.000000e+00> : vector<2x64xf32>
    %2 = tpu.matmul %0, %1, %cst {dimension_numbers = #tpu.dot_dimension_numbers<[1], [0], [0], [1], [0, 0, 1, 1], [], []>} : vector<2x512xbf16>, vector<512x64xbf16>, vector<2x64xf32> -> vector<2x64xf32>
    %c0_3 = arith.constant 0 : index
    %c0_4 = arith.constant 0 : index
    %3 = vector.load %arg3[%c0_3, %c0_4] : memref<1x64xf32, #tpu.memory_space<vmem>>, vector<1x64xf32>
    %4 = vector.broadcast %3 : vector<1x64xf32> to vector<2x64xf32>
    %5 = arith.addf %2, %4 : vector<2x64xf32>
    %cst_5 = arith.constant 0.000000e+00 : f32
    %6 = vector.broadcast %cst_5 : f32 to vector<2x64xf32>
    %7 = arith.maximumf %5, %6 : vector<2x64xf32>
    %8 = arith.truncf %7 : vector<2x64xf32> to vector<2x64xbf16>
    %c0_6 = arith.constant 0 : index
    %c0_7 = arith.constant 0 : index
    %9 = vector.load %arg4[%c0_6, %c0_7] : memref<64x16xbf16, #tpu.memory_space<vmem>>, vector<64x16xbf16>
    %cst_8 = arith.constant dense<0.000000e+00> : vector<2x16xf32>
    %10 = tpu.matmul %8, %9, %cst_8 {dimension_numbers = #tpu.dot_dimension_numbers<[1], [0], [0], [1], [0, 0, 1, 1], [], []>} : vector<2x64xbf16>, vector<64x16xbf16>, vector<2x16xf32> -> vector<2x16xf32>
    %c0_9 = arith.constant 0 : index
    %c0_10 = arith.constant 0 : index
    %11 = vector.load %arg5[%c0_9, %c0_10] : memref<1x16xf32, #tpu.memory_space<vmem>>, vector<1x16xf32>
    %12 = vector.broadcast %11 : vector<1x16xf32> to vector<2x16xf32>
    %13 = arith.addf %10, %12 : vector<2x16xf32>
    %cst_11 = arith.constant 0.000000e+00 : f32
    %14 = vector.broadcast %cst_11 : f32 to vector<2x16xf32>
    %15 = arith.maximumf %13, %14 : vector<2x16xf32>
    %c0_12 = arith.constant 0 : index
    %c0_13 = arith.constant 0 : index
    %16 = vector.load %arg6[%c0_12, %c0_13] : memref<2x16xf32, #tpu.memory_space<vmem>>, vector<2x16xf32>
    tpu.vector_store %arg6[%c0_12, %c0_13], %15 {strides = array<i32>} : memref<2x16xf32, #tpu.memory_space<vmem>>, vector<2x16xf32>,
    return
  }
  func.func @transform_0(%arg0: i32) -> (i32, i32) {
    %c0_i32 = arith.constant 0 : i32
    %c0_i32_0 = arith.constant 0 : i32
    return %arg0, %c0_i32 : i32, i32
  }
  func.func @transform_1(%arg0: i32) -> (i32, i32) {
    %c0_i32 = arith.constant 0 : i32
    %c0_i32_0 = arith.constant 0 : i32
    %c0_i32_1 = arith.constant 0 : i32
    return %c0_i32, %c0_i32_0 : i32, i32
  }
  func.func @transform_2(%arg0: i32) -> (i32, i32) {
    %c0_i32 = arith.constant 0 : i32
    %c0_i32_0 = arith.constant 0 : i32
    %c0_i32_1 = arith.constant 0 : i32
    return %c0_i32, %c0_i32_0 : i32, i32
  }
  func.func @transform_3(%arg0: i32) -> (i32, i32) {
    %c0_i32 = arith.constant 0 : i32
    %c0_i32_0 = arith.constant 0 : i32
    %c0_i32_1 = arith.constant 0 : i32
    return %c0_i32, %c0_i32_0 : i32, i32
  }
  func.func @transform_4(%arg0: i32) -> (i32, i32) {
    %c0_i32 = arith.constant 0 : i32
    %c0_i32_0 = arith.constant 0 : i32
    %c0_i32_1 = arith.constant 0 : i32
    return %c0_i32, %c0_i32_0 : i32, i32
  }
  func.func @transform_5(%arg0: i32) -> (i32, i32) {
    %c0_i32 = arith.constant 0 : i32
    %c0_i32_0 = arith.constant 0 : i32
    return %arg0, %c0_i32 : i32, i32
  }
}

</mosaic_0001>

<llo_original>
// kernel: mnist_convnet_forward.3
$region0: #{mnist_convnet_forward.3}
  #allocation0 [shape = 'u32[]', space=smem, size = 0x4, offset = 0x4, fixed_abs, tag = 'smem constant byte address 0x4 - core index']
  #allocation1 [shape = 'u32[144,128]{1,0:T(1,128)}', space=vmem, size = 0x12000, scoped, tag = 'internal scratch']
  %s0 = inlined_call_operand.vmem [shape: bf16[4,288,32], index: 0, kind: input, shape index: {}]
  %s1 = inlined_call_operand.vmem [shape: bf16[32,16], index: 1, kind: input, shape index: {}]
  %s2 = inlined_call_operand.vmem [shape: f32[1,16], index: 2, kind: input, shape index: {}]
  %s3 = inlined_call_operand.vmem [shape: bf16[288,16], index: 3, kind: output, shape index: {}]
  %s4 = sld [smem:[#allocation0]]
  $region86: #{mnist_convnet_forward.3} parent=0
    _
  %s6 = ssub.s32 1, %s4
  %s7 = scalar_select 0, %s6, %s4
  $region1: #{mnist_convnet_forward.3} parent=0
    #allocation2 [shape = 'u8[294912]{0}', space=vmem, size = 0x48000, scoped, tag = 'input window, operand 0']
    loop: start=0, step=1, limit=4
    $region2: #{mnist_convnet_forward.3} parent=1 // loop_pre_header
      _
    $region3: #{mnist_convnet_forward.3} parent=1 // loop_header
      %s9 = sphi 0, %s13
      %p10 = scmp.ge.s32.totalorder %s9, 4
      %s19 = sphi 0, %s21
      %s22 = sphi 0, %s19
      %s23 = sphi 0, %s22
      %s39 = sphi 0, %s23
      %s43 = sphi 0, %s43
      %s45 = sphi 0, %s43
      %s46 = sphi 0, %s45
      %s60 = sphi 0, %s46
      %s64 = sphi 0, %s64
      %s66 = sphi 0, %s64
      %s67 = sphi 0, %s66
      %s81 = sphi 0, %s67
      %s87 = sphi 0, %s89
      %s90 = sphi 0, %s87
      %s91 = sphi 0, %s90
      %s107 = sphi 0, %s91
    $region4: #{mnist_convnet_forward.3} parent=1 // loop_header_branch
      %12 = sbr.rel (%p10) target = $region8
    $region5: #{mnist_convnet_forward.3} parent=1 // loop_body
      %s14 = ssub.s32 %s9, 1
      %s15 = ssub.s32 %s9, 2
      %s16 = sadd.s32 %s9, 1
      %s17 = ssub.s32 %s9, %s16
      %p18 = scmp.eq.s32.totalorder %s17, 0
      %s20 = sadd.s32 %s19, 1
      %s21 = scalar_select %p18, %s19, %s20
      %p24 = pneg %p18
      %p25 = scmp.eq.s32.totalorder %s9, 1
      %p26 = por %p24, %p25
      %p27 = scmp.ne.s32.totalorder %s19, %s22
      %p28 = scmp.eq.s32.totalorder %s9, 0
      %p29 = por %p27, %p28
      %p30 = scmp.ne.s32.totalorder %s19, %s22
      %p31 = scmp.eq.s32.totalorder %s14, 1
      %p32 = por %p30, %p31
      %p33 = scmp.ne.s32.totalorder %s22, %s23
      %p34 = scmp.eq.s32.totalorder %s14, 0
      %p35 = por %p33, %p34
      %p36 = scmp.ne.s32.totalorder %s22, %s23
      %p37 = scmp.eq.s32.totalorder %s15, 1
      %p38 = por %p36, %p37
      %p40 = scmp.ne.s32.totalorder %s23, %s39
      %p41 = scmp.eq.s32.totalorder %s15, 0
      %p42 = por %p40, %p41
      %s44 = sadd.s32 %s43, 1
      %p47 = scmp.eq.s32.totalorder %s9, 1
      %p48 = scmp.ne.s32.totalorder %s43, %s45
      %p49 = scmp.eq.s32.totalorder %s9, 0
      %p50 = por %p48, %p49
      %p51 = scmp.ne.s32.totalorder %s43, %s45
      %p52 = scmp.eq.s32.totalorder %s14, 1
      %p53 = por %p51, %p52
      %p54 = scmp.ne.s32.totalorder %s45, %s46
      %p55 = scmp.eq.s32.totalorder %s14, 0
      %p56 = por %p54, %p55
      %p57 = scmp.ne.s32.totalorder %s45, %s46
      %p58 = scmp.eq.s32.totalorder %s15, 1
      %p59 = por %p57, %p58
      %p61 = scmp.ne.s32.totalorder %s46, %s60
      %p62 = scmp.eq.s32.totalorder %s15, 0
      %p63 = por %p61, %p62
      %s65 = sadd.s32 %s64, 1
      %p68 = scmp.eq.s32.totalorder %s9, 1
      %p69 = scmp.ne.s32.totalorder %s64, %s66
      %p70 = scmp.eq.s32.totalorder %s9, 0
      %p71 = por %p69, %p70
      %p72 = scmp.ne.s32.totalorder %s64, %s66
      %p73 = scmp.eq.s32.totalorder %s14, 1
      %p74 = por %p72, %p73
      %p75 = scmp.ne.s32.totalorder %s66, %s67
      %p76 = scmp.eq.s32.totalorder %s14, 0
      %p77 = por %p75, %p76
      %p78 = scmp.ne.s32.totalorder %s66, %s67
      %p79 = scmp.eq.s32.totalorder %s15, 1
      %p80 = por %p78, %p79
      %p82 = scmp.ne.s32.totalorder %s67, %s81
      %p83 = scmp.eq.s32.totalorder %s15, 0
      %p84 = por %p82, %p83
      %s85 = ssub.s32 %s9, %s16
      %p86 = scmp.eq.s32.totalorder %s85, 0
      %s88 = sadd.s32 %s87, 1
      %s89 = scalar_select %p86, %s87, %s88
      %p92 = pneg %p86
      %p93 = scmp.eq.s32.totalorder %s9, 1
      %p94 = por %p92, %p93
      %p95 = scmp.ne.s32.totalorder %s87, %s90
      %p96 = scmp.eq.s32.totalorder %s9, 0
      %p97 = por %p95, %p96
      %p98 = scmp.ne.s32.totalorder %s87, %s90
      %p99 = scmp.eq.s32.totalorder %s14, 1
      %p100 = por %p98, %p99
      %p101 = scmp.ne.s32.totalorder %s90, %s91
      %p102 = scmp.eq.s32.totalorder %s14, 0
      %p103 = por %p101, %p102
      %p104 = scmp.ne.s32.totalorder %s90, %s91
      %p105 = scmp.eq.s32.totalorder %s15, 1
      %p106 = por %p104, %p105
      %p108 = scmp.ne.s32.totalorder %s91, %s107
      %p109 = scmp.eq.s32.totalorder %s15, 0
      %p110 = por %p108, %p109
      %p111 = scmp.le.s32.totalorder 1, %s9
      %p112 = scmp.lt.s32.totalorder %s9, 3
      %p113 = pnand %p111, %p112
      %p114 = pneg %p113
      // Predicated region
      $region9: #{mnist_convnet_forward.3} parent=5 // pred_check
        _
      $region10: #{mnist_convnet_forward.3} parent=5 // pred_check_branch
        %116 = sbr.rel (%p113) target = $region12
      $region11: #{mnist_convnet_forward.3} parent=5 // pred_region
        %s117 = ssub.s32 %s9, 1
        // Predicated region
        $region13: #{mnist_convnet_forward.3} parent=11 // pred_check
          %p118 = pneg %p56
        $region14: #{mnist_convnet_forward.3} parent=11 // pred_check_branch
          %120 = sbr.rel (%p118) target = $region16
        $region15: #{mnist_convnet_forward.3} parent=11 // pred_region
          _
        $region16: #{mnist_convnet_forward.3} parent=11 // pred_fallthru
          _
        // Predicated region
        $region17: #{mnist_convnet_forward.3} parent=11 // pred_check
          %p121 = pneg %p77
        $region18: #{mnist_convnet_forward.3} parent=11 // pred_check_branch
          %123 = sbr.rel (%p121) target = $region20
        $region19: #{mnist_convnet_forward.3} parent=11 // pred_region
          _
        $region20: #{mnist_convnet_forward.3} parent=11 // pred_fallthru
          _
      $region12: #{mnist_convnet_forward.3} parent=5 // pred_fallthru
        _
      %p124 = scmp.lt.s32.totalorder %s9, 2
      // Predicated region
      $region21: #{mnist_convnet_forward.3} parent=5 // pred_check
        %p125 = pneg %p124
      $region22: #{mnist_convnet_forward.3} parent=5 // pred_check_branch
        %127 = sbr.rel (%p125) target = $region24
      $region23: #{mnist_convnet_forward.3} parent=5 // pred_region
        // Predicated region
        $region25: #{mnist_convnet_forward.3} parent=23 // pred_check
          %p128 = pneg %p29
        $region26: #{mnist_convnet_forward.3} parent=23 // pred_check_branch
          %130 = sbr.rel (%p128) target = $region28
        $region27: #{mnist_convnet_forward.3} parent=23 // pred_region
          %s131 = sand.u32 %s19, 1
          %s132 = sand.u32 %s19, 1
          %s133 = smul.addr %s132, 288
          %s134 = scalar_lea.vmem [#allocation2], %s133
          %s135 = smul.u32 18, %s9
          %s136 = smul.addr %s135, 4
          %s137 = scalar_lea.vmem %s0, %s136
          // Predicated region
          $region29: #{mnist_convnet_forward.3} parent=27 // pred_check
            _
          $region30: #{mnist_convnet_forward.3} parent=27 // pred_check_branch
            %139 = sbr.rel (0) target = $region32
          $region31: #{mnist_convnet_forward.3} parent=27 // pred_region
            // Predicated region
            $region33: #{mnist_convnet_forward.3} parent=31 // pred_check
              _
            $region34: #{mnist_convnet_forward.3} parent=31 // pred_check_branch
              %141 = sbr.rel target = $region36
            $region35: #{mnist_convnet_forward.3} parent=31 // pred_region
              // Predicated region
              $region48: #{mnist_convnet_forward.3} parent=35 // pred_check
                _
              $region49: #{mnist_convnet_forward.3} parent=35 // pred_check_branch
                %299 = sbr.rel (0) target = $region51
              $region50: #{mnist_convnet_forward.3} parent=35 // pred_region
                loop: start=0, step=1, limit=1
                $region52: #{mnist_convnet_forward.3} parent=50 // loop_pre_header
                  _
                $region53: #{mnist_convnet_forward.3} parent=50 // loop_header
                  %s301 = sphi 0, %s305
                  %p302 = scmp.ge.s32.totalorder %s301, 1
                  %s306 = sphi %s137, %s137
                  %s307 = sphi %s134, %s134
                $region54: #{mnist_convnet_forward.3} parent=50 // loop_header_branch
                  %304 = sbr.rel (%p302) target = $region58
                $region55: #{mnist_convnet_forward.3} parent=50 // loop_body
                  _
                $region56: #{mnist_convnet_forward.3} parent=50 // loop_footer
                  %s305 = sadd.s32 1, %s301
                $region57: #{mnist_convnet_forward.3} parent=50 // loop_footer_branch
                  %300 = sbr.rel target = $region53
                $region58: #{mnist_convnet_forward.3} parent=50 // loop_exit
                  _
                %s309 = ssub.s32 16, 1
                loop: start=0, step=1, limit=1
                $region59: #{mnist_convnet_forward.3} parent=50 // loop_pre_header
                  _
                $region60: #{mnist_convnet_forward.3} parent=50 // loop_header
                  %s311 = sphi 0, %s315
                  %p312 = scmp.ge.s32.totalorder %s311, 1
                  %s316 = sphi %s137, %s137
                  %s317 = sphi %s134, %s134
                $region61: #{mnist_convnet_forward.3} parent=50 // loop_header_branch
                  %314 = sbr.rel (%p312) target = $region65
                $region62: #{mnist_convnet_forward.3} parent=50 // loop_body
                  %v318 = vld [vmem:[%s316] sm:%s309]
                  %319 = vst [vmem:[%s317] sm:%s309] %v318
                  %v320 = vld [vmem:[%s316 + $0x4] sm:%s309]
                  %321 = vst [vmem:[%s317 + $0x4] sm:%s309] %v320
                  %v322 = vld [vmem:[%s316 + $0x8] sm:%s309]
                  %323 = vst [vmem:[%s317 + $0x8] sm:%s309] %v322
                  %v324 = vld [vmem:[%s316 + $0xc] sm:%s309]
                  %325 = vst [vmem:[%s317 + $0xc] sm:%s309] %v324
                  %v326 = vld [vmem:[%s316 + $0x10] sm:%s309]
                  %327 = vst [vmem:[%s317 + $0x10] sm:%s309] %v326
                  %v328 = vld [vmem:[%s316 + $0x14] sm:%s309]
                  %329 = vst [vmem:[%s317 + $0x14] sm:%s309] %v328
                  %v330 = vld [vmem:[%s316 + $0x18] sm:%s309]
                  %331 = vst [vmem:[%s317 + $0x18] sm:%s309] %v330
                  %v332 = vld [vmem:[%s316 + $0x1c] sm:%s309]
                  %333 = vst [vmem:[%s317 + $0x1c] sm:%s309] %v332
                  %v334 = vld [vmem:[%s316 + $0x20] sm:%s309]
                  %335 = vst [vmem:[%s317 + $0x20] sm:%s309] %v334
                  %v336 = vld [vmem:[%s316 + $0x24] sm:%s309]
                  %337 = vst [vmem:[%s317 + $0x24] sm:%s309] %v336
                  %v338 = vld [vmem:[%s316 + $0x28] sm:%s309]
                  %339 = vst [vmem:[%s317 + $0x28] sm:%s309] %v338
                  %v340 = vld [vmem:[%s316 + $0x2c] sm:%s309]
                  %341 = vst [vmem:[%s317 + $0x2c] sm:%s309] %v340
                  %v342 = vld [vmem:[%s316 + $0x30] sm:%s309]
                  %343 = vst [vmem:[%s317 + $0x30] sm:%s309] %v342
                  %v344 = vld [vmem:[%s316 + $0x34] sm:%s309]
                  %345 = vst [vmem:[%s317 + $0x34] sm:%s309] %v344
                  %v346 = vld [vmem:[%s316 + $0x38] sm:%s309]
                  %347 = vst [vmem:[%s317 + $0x38] sm:%s309] %v346
                  %v348 = vld [vmem:[%s316 + $0x3c] sm:%s309]
                  %349 = vst [vmem:[%s317 + $0x3c] sm:%s309] %v348
                  %v350 = vld [vmem:[%s316 + $0x40] sm:%s309]
                  %351 = vst [vmem:[%s317 + $0x40] sm:%s309] %v350
                  %v352 = vld [vmem:[%s316 + $0x44] sm:%s309]
                  %353 = vst [vmem:[%s317 + $0x44] sm:%s309] %v352
                  %v354 = vld [vmem:[%s316 + $0x90] sm:%s309]
                  %355 = vst [vmem:[%s317 + $0x48] sm:%s309] %v354
                  %v356 = vld [vmem:[%s316 + $0x94] sm:%s309]
                  %357 = vst [vmem:[%s317 + $0x4c] sm:%s309] %v356
                  %v358 = vld [vmem:[%s316 + $0x98] sm:%s309]
                  %359 = vst [vmem:[%s317 + $0x50] sm:%s309] %v358
                  %v360 = vld [vmem:[%s316 + $0x9c] sm:%s309]
                  %361 = vst [vmem:[%s317 + $0x54] sm:%s309] %v360
                  %v362 = vld [vmem:[%s316 + $0xa0] sm:%s309]
                  %363 = vst [vmem:[%s317 + $0x58] sm:%s309] %v362
                  %v364 = vld [vmem:[%s316 + $0xa4] sm:%s309]
                  %365 = vst [vmem:[%s317 + $0x5c] sm:%s309] %v364
                  %v366 = vld [vmem:[%s316 + $0xa8] sm:%s309]
                  %367 = vst [vmem:[%s317 + $0x60] sm:%s309] %v366
                  %v368 = vld [vmem:[%s316 + $0xac] sm:%s309]
                  %369 = vst [vmem:[%s317 + $0x64] sm:%s309] %v368
                  %v370 = vld [vmem:[%s316 + $0xb0] sm:%s309]
                  %371 = vst [vmem:[%s317 + $0x68] sm:%s309] %v370
                  %v372 = vld [vmem:[%s316 + $0xb4] sm:%s309]
                  %373 = vst [vmem:[%s317 + $0x6c] sm:%s309] %v372
                  %v374 = vld [vmem:[%s316 + $0xb8] sm:%s309]
                  %375 = vst [vmem:[%s317 + $0x70] sm:%s309] %v374
                  %v376 = vld [vmem:[%s316 + $0xbc] sm:%s309]
                  %377 = vst [vmem:[%s317 + $0x74] sm:%s309] %v376
                  %v378 = vld [vmem:[%s316 + $0xc0] sm:%s309]
                  %379 = vst [vmem:[%s317 + $0x78] sm:%s309] %v378
                  %v380 = vld [vmem:[%s316 + $0xc4] sm:%s309]
                  %381 = vst [vmem:[%s317 + $0x7c] sm:%s309] %v380
                  %v382 = vld [vmem:[%s316 + $0xc8] sm:%s309]
                  %383 = vst [vmem:[%s317 + $0x80] sm:%s309] %v382
                  %v384 = vld [vmem:[%s316 + $0xcc] sm:%s309]
                  %385 = vst [vmem:[%s317 + $0x84] sm:%s309] %v384
                  %v386 = vld [vmem:[%s316 + $0xd0] sm:%s309]
                  %387 = vst [vmem:[%s317 + $0x88] sm:%s309] %v386
                  %v388 = vld [vmem:[%s316 + $0xd4] sm:%s309]
                  %389 = vst [vmem:[%s317 + $0x8c] sm:%s309] %v388
                  %v390 = vld [vmem:[%s316 + $0x120] sm:%s309]
                  %391 = vst [vmem:[%s317 + $0x90] sm:%s309] %v390
                  %v392 = vld [vmem:[%s316 + $0x124] sm:%s309]
                  %393 = vst [vmem:[%s317 + $0x94] sm:%s309] %v392
                  %v394 = vld [vmem:[%s316 + $0x128] sm:%s309]
                  %395 = vst [vmem:[%s317 + $0x98] sm:%s309] %v394
                  %v396 = vld [vmem:[%s316 + $0x12c] sm:%s309]
                  %397 = vst [vmem:[%s317 + $0x9c] sm:%s309] %v396
                  %v398 = vld [vmem:[%s316 + $0x130] sm:%s309]
                  %399 = vst [vmem:[%s317 + $0xa0] sm:%s309] %v398
                  %v400 = vld [vmem:[%s316 + $0x134] sm:%s309]
                  %401 = vst [vmem:[%s317 + $0xa4] sm:%s309] %v400
                  %v402 = vld [vmem:[%s316 + $0x138] sm:%s309]
                  %403 = vst [vmem:[%s317 + $0xa8] sm:%s309] %v402
                  %v404 = vld [vmem:[%s316 + $0x13c] sm:%s309]
                  %405 = vst [vmem:[%s317 + $0xac] sm:%s309] %v404
                  %v406 = vld [vmem:[%s316 + $0x140] sm:%s309]
                  %407 = vst [vmem:[%s317 + $0xb0] sm:%s309] %v406
                  %v408 = vld [vmem:[%s316 + $0x144] sm:%s309]
                  %409 = vst [vmem:[%s317 + $0xb4] sm:%s309] %v408
                  %v410 = vld [vmem:[%s316 + $0x148] sm:%s309]
                  %411 = vst [vmem:[%s317 + $0xb8] sm:%s309] %v410
                  %v412 = vld [vmem:[%s316 + $0x14c] sm:%s309]
                  %413 = vst [vmem:[%s317 + $0xbc] sm:%s309] %v412
                  %v414 = vld [vmem:[%s316 + $0x150] sm:%s309]
                  %415 = vst [vmem:[%s317 + $0xc0] sm:%s309] %v414
                  %v416 = vld [vmem:[%s316 + $0x154] sm:%s309]
                  %417 = vst [vmem:[%s317 + $0xc4] sm:%s309] %v416
                  %v418 = vld [vmem:[%s316 + $0x158] sm:%s309]
                  %419 = vst [vmem:[%s317 + $0xc8] sm:%s309] %v418
                  %v420 = vld [vmem:[%s316 + $0x15c] sm:%s309]
                  %421 = vst [vmem:[%s317 + $0xcc] sm:%s309] %v420
                  %v422 = vld [vmem:[%s316 + $0x160] sm:%s309]
                  %423 = vst [vmem:[%s317 + $0xd0] sm:%s309] %v422
                  %v424 = vld [vmem:[%s316 + $0x164] sm:%s309]
                  %425 = vst [vmem:[%s317 + $0xd4] sm:%s309] %v424
                  %v426 = vld [vmem:[%s316 + $0x1b0] sm:%s309]
                  %427 = vst [vmem:[%s317 + $0xd8] sm:%s309] %v426
                  %v428 = vld [vmem:[%s316 + $0x1b4] sm:%s309]
                  %429 = vst [vmem:[%s317 + $0xdc] sm:%s309] %v428
                  %v430 = vld [vmem:[%s316 + $0x1b8] sm:%s309]
                  %431 = vst [vmem:[%s317 + $0xe0] sm:%s309] %v430
                  %v432 = vld [vmem:[%s316 + $0x1bc] sm:%s309]
                  %433 = vst [vmem:[%s317 + $0xe4] sm:%s309] %v432
                  %v434 = vld [vmem:[%s316 + $0x1c0] sm:%s309]
                  %435 = vst [vmem:[%s317 + $0xe8] sm:%s309] %v434
                  %v436 = vld [vmem:[%s316 + $0x1c4] sm:%s309]
                  %437 = vst [vmem:[%s317 + $0xec] sm:%s309] %v436
                  %v438 = vld [vmem:[%s316 + $0x1c8] sm:%s309]
                  %439 = vst [vmem:[%s317 + $0xf0] sm:%s309] %v438
                  %v440 = vld [vmem:[%s316 + $0x1cc] sm:%s309]
                  %441 = vst [vmem:[%s317 + $0xf4] sm:%s309] %v440
                  %v442 = vld [vmem:[%s316 + $0x1d0] sm:%s309]
                  %443 = vst [vmem:[%s317 + $0xf8] sm:%s309] %v442
                  %v444 = vld [vmem:[%s316 + $0x1d4] sm:%s309]
                  %445 = vst [vmem:[%s317 + $0xfc] sm:%s309] %v444
                  %v446 = vld [vmem:[%s316 + $0x1d8] sm:%s309]
                  %447 = vst [vmem:[%s317 + $0x100] sm:%s309] %v446
                  %v448 = vld [vmem:[%s316 + $0x1dc] sm:%s309]
                  %449 = vst [vmem:[%s317 + $0x104] sm:%s309] %v448
                  %v450 = vld [vmem:[%s316 + $0x1e0] sm:%s309]
                  %451 = vst [vmem:[%s317 + $0x108] sm:%s309] %v450
                  %v452 = vld [vmem:[%s316 + $0x1e4] sm:%s309]
                  %453 = vst [vmem:[%s317 + $0x10c] sm:%s309] %v452
                  %v454 = vld [vmem:[%s316 + $0x1e8] sm:%s309]
                  %455 = vst [vmem:[%s317 + $0x110] sm:%s309] %v454
                  %v456 = vld [vmem:[%s316 + $0x1ec] sm:%s309]
                  %457 = vst [vmem:[%s317 + $0x114] sm:%s309] %v456
                  %v458 = vld [vmem:[%s316 + $0x1f0] sm:%s309]
                  %459 = vst [vmem:[%s317 + $0x118] sm:%s309] %v458
                  %v460 = vld [vmem:[%s316 + $0x1f4] sm:%s309]
                  %461 = vst [vmem:[%s317 + $0x11c] sm:%s309] %v460
                $region63: #{mnist_convnet_forward.3} parent=50 // loop_footer
                  %s315 = sadd.s32 1, %s311
                $region64: #{mnist_convnet_forward.3} parent=50 // loop_footer_branch
                  %310 = sbr.rel target = $region60
                $region65: #{mnist_convnet_forward.3} parent=50 // loop_exit
                  _
              $region51: #{mnist_convnet_forward.3} parent=35 // pred_fallthru
                _
            $region36: #{mnist_convnet_forward.3} parent=31 // pred_fallthru
              _
            // Predicated region
            $region37: #{mnist_convnet_forward.3} parent=31 // pred_check
              _
            $region38: #{mnist_convnet_forward.3} parent=31 // pred_check_branch
              %143 = sbr.rel (0) target = $region40
            $region39: #{mnist_convnet_forward.3} parent=31 // pred_region
              %s145 = ssub.s32 16, 1
              loop: start=0, step=1, limit=1
              $region41: #{mnist_convnet_forward.3} parent=39 // loop_pre_header
                _
              $region42: #{mnist_convnet_forward.3} parent=39 // loop_header
                %s147 = sphi 0, %s151
                %p148 = scmp.ge.s32.totalorder %s147, 1
                %s152 = sphi %s137, %s137
                %s153 = sphi %s134, %s134
              $region43: #{mnist_convnet_forward.3} parent=39 // loop_header_branch
                %150 = sbr.rel (%p148) target = $region47
              $region44: #{mnist_convnet_forward.3} parent=39 // loop_body
                %v154 = vld [vmem:[%s152] sm:%s145]
                %155 = vst [vmem:[%s153] sm:%s145] %v154
                %v156 = vld [vmem:[%s152 + $0x4] sm:%s145]
                %157 = vst [vmem:[%s153 + $0x4] sm:%s145] %v156
                %v158 = vld [vmem:[%s152 + $0x8] sm:%s145]
                %159 = vst [vmem:[%s153 + $0x8] sm:%s145] %v158
                %v160 = vld [vmem:[%s152 + $0xc] sm:%s145]
                %161 = vst [vmem:[%s153 + $0xc] sm:%s145] %v160
                %v162 = vld [vmem:[%s152 + $0x10] sm:%s145]
                %163 = vst [vmem:[%s153 + $0x10] sm:%s145] %v162
                %v164 = vld [vmem:[%s152 + $0x14] sm:%s145]
                %165 = vst [vmem:[%s153 + $0x14] sm:%s145] %v164
                %v166 = vld [vmem:[%s152 + $0x18] sm:%s145]
                %167 = vst [vmem:[%s153 + $0x18] sm:%s145] %v166
                %v168 = vld [vmem:[%s152 + $0x1c] sm:%s145]
                %169 = vst [vmem:[%s153 + $0x1c] sm:%s145] %v168
                %v170 = vld [vmem:[%s152 + $0x20] sm:%s145]
                %171 = vst [vmem:[%s153 + $0x20] sm:%s145] %v170
                %v172 = vld [vmem:[%s152 + $0x24] sm:%s145]
                %173 = vst [vmem:[%s153 + $0x24] sm:%s145] %v172
                %v174 = vld [vmem:[%s152 + $0x28] sm:%s145]
                %175 = vst [vmem:[%s153 + $0x28] sm:%s145] %v174
                %v176 = vld [vmem:[%s152 + $0x2c] sm:%s145]
                %177 = vst [vmem:[%s153 + $0x2c] sm:%s145] %v176
                %v178 = vld [vmem:[%s152 + $0x30] sm:%s145]
                %179 = vst [vmem:[%s153 + $0x30] sm:%s145] %v178
                %v180 = vld [vmem:[%s152 + $0x34] sm:%s145]
                %181 = vst [vmem:[%s153 + $0x34] sm:%s145] %v180
                %v182 = vld [vmem:[%s152 + $0x38] sm:%s145]
                %183 = vst [vmem:[%s153 + $0x38] sm:%s145] %v182
                %v184 = vld [vmem:[%s152 + $0x3c] sm:%s145]
                %185 = vst [vmem:[%s153 + $0x3c] sm:%s145] %v184
                %v186 = vld [vmem:[%s152 + $0x40] sm:%s145]
                %187 = vst [vmem:[%s153 + $0x40] sm:%s145] %v186
                %v188 = vld [vmem:[%s152 + $0x44] sm:%s145]
                %189 = vst [vmem:[%s153 + $0x44] sm:%s145] %v188
                %v190 = vld [vmem:[%s152 + $0x90] sm:%s145]
                %191 = vst [vmem:[%s153 + $0x48] sm:%s145] %v190
                %v192 = vld [vmem:[%s152 + $0x94] sm:%s145]
                %193 = vst [vmem:[%s153 + $0x4c] sm:%s145] %v192
                %v194 = vld [vmem:[%s152 + $0x98] sm:%s145]
                %195 = vst [vmem:[%s153 + $0x50] sm:%s145] %v194
                %v196 = vld [vmem:[%s152 + $0x9c] sm:%s145]
                %197 = vst [vmem:[%s153 + $0x54] sm:%s145] %v196
                %v198 = vld [vmem:[%s152 + $0xa0] sm:%s145]
                %199 = vst [vmem:[%s153 + $0x58] sm:%s145] %v198
                %v200 = vld [vmem:[%s152 + $0xa4] sm:%s145]
                %201 = vst [vmem:[%s153 + $0x5c] sm:%s145] %v200
                %v202 = vld [vmem:[%s152 + $0xa8] sm:%s145]
                %203 = vst [vmem:[%s153 + $0x60] sm:%s145] %v202
                %v204 = vld [vmem:[%s152 + $0xac] sm:%s145]
                %205 = vst [vmem:[%s153 + $0x64] sm:%s145] %v204
                %v206 = vld [vmem:[%s152 + $0xb0] sm:%s145]
                %207 = vst [vmem:[%s153 + $0x68] sm:%s145] %v206
                %v208 = vld [vmem:[%s152 + $0xb4] sm:%s145]
                %209 = vst [vmem:[%s153 + $0x6c] sm:%s145] %v208
                %v210 = vld [vmem:[%s152 + $0xb8] sm:%s145]
                %211 = vst [vmem:[%s153 + $0x70] sm:%s145] %v210
                %v212 = vld [vmem:[%s152 + $0xbc] sm:%s145]
                %213 = vst [vmem:[%s153 + $0x74] sm:%s145] %v212
                %v214 = vld [vmem:[%s152 + $0xc0] sm:%s145]
                %215 = vst [vmem:[%s153 + $0x78] sm:%s145] %v214
                %v216 = vld [vmem:[%s152 + $0xc4] sm:%s145]
                %217 = vst [vmem:[%s153 + $0x7c] sm:%s145] %v216
                %v218 = vld [vmem:[%s152 + $0xc8] sm:%s145]
                %219 = vst [vmem:[%s153 + $0x80] sm:%s145] %v218
                %v220 = vld [vmem:[%s152 + $0xcc] sm:%s145]
                %221 = vst [vmem:[%s153 + $0x84] sm:%s145] %v220
                %v222 = vld [vmem:[%s152 + $0xd0] sm:%s145]
                %223 = vst [vmem:[%s153 + $0x88] sm:%s145] %v222
                %v224 = vld [vmem:[%s152 + $0xd4] sm:%s145]
                %225 = vst [vmem:[%s153 + $0x8c] sm:%s145] %v224
                %v226 = vld [vmem:[%s152 + $0x120] sm:%s145]
                %227 = vst [vmem:[%s153 + $0x90] sm:%s145] %v226
                %v228 = vld [vmem:[%s152 + $0x124] sm:%s145]
                %229 = vst [vmem:[%s153 + $0x94] sm:%s145] %v228
                %v230 = vld [vmem:[%s152 + $0x128] sm:%s145]
                %231 = vst [vmem:[%s153 + $0x98] sm:%s145] %v230
                %v232 = vld [vmem:[%s152 + $0x12c] sm:%s145]
                %233 = vst [vmem:[%s153 + $0x9c] sm:%s145] %v232
                %v234 = vld [vmem:[%s152 + $0x130] sm:%s145]
                %235 = vst [vmem:[%s153 + $0xa0] sm:%s145] %v234
                %v236 = vld [vmem:[%s152 + $0x134] sm:%s145]
                %237 = vst [vmem:[%s153 + $0xa4] sm:%s145] %v236
                %v238 = vld [vmem:[%s152 + $0x138] sm:%s145]
                %239 = vst [vmem:[%s153 + $0xa8] sm:%s145] %v238
                %v240 = vld [vmem:[%s152 + $0x13c] sm:%s145]
                %241 = vst [vmem:[%s153 + $0xac] sm:%s145] %v240
                %v242 = vld [vmem:[%s152 + $0x140] sm:%s145]
                %243 = vst [vmem:[%s153 + $0xb0] sm:%s145] %v242
                %v244 = vld [vmem:[%s152 + $0x144] sm:%s145]
                %245 = vst [vmem:[%s153 + $0xb4] sm:%s145] %v244
                %v246 = vld [vmem:[%s152 + $0x148] sm:%s145]
                %247 = vst [vmem:[%s153 + $0xb8] sm:%s145] %v246
                %v248 = vld [vmem:[%s152 + $0x14c] sm:%s145]
                %249 = vst [vmem:[%s153 + $0xbc] sm:%s145] %v248
                %v250 = vld [vmem:[%s152 + $0x150] sm:%s145]
                %251 = vst [vmem:[%s153 + $0xc0] sm:%s145] %v250
                %v252 = vld [vmem:[%s152 + $0x154] sm:%s145]
                %253 = vst [vmem:[%s153 + $0xc4] sm:%s145] %v252
                %v254 = vld [vmem:[%s152 + $0x158] sm:%s145]
                %255 = vst [vmem:[%s153 + $0xc8] sm:%s145] %v254
                %v256 = vld [vmem:[%s152 + $0x15c] sm:%s145]
                %257 = vst [vmem:[%s153 + $0xcc] sm:%s145] %v256
                %v258 = vld [vmem:[%s152 + $0x160] sm:%s145]
                %259 = vst [vmem:[%s153 + $0xd0] sm:%s145] %v258
                %v260 = vld [vmem:[%s152 + $0x164] sm:%s145]
                %261 = vst [vmem:[%s153 + $0xd4] sm:%s145] %v260
                %v262 = vld [vmem:[%s152 + $0x1b0] sm:%s145]
                %263 = vst [vmem:[%s153 + $0xd8] sm:%s145] %v262
                %v264 = vld [vmem:[%s152 + $0x1b4] sm:%s145]
                %265 = vst [vmem:[%s153 + $0xdc] sm:%s145] %v264
                %v266 = vld [vmem:[%s152 + $0x1b8] sm:%s145]
                %267 = vst [vmem:[%s153 + $0xe0] sm:%s145] %v266
                %v268 = vld [vmem:[%s152 + $0x1bc] sm:%s145]
                %269 = vst [vmem:[%s153 + $0xe4] sm:%s145] %v268
                %v270 = vld [vmem:[%s152 + $0x1c0] sm:%s145]
                %271 = vst [vmem:[%s153 + $0xe8] sm:%s145] %v270
                %v272 = vld [vmem:[%s152 + $0x1c4] sm:%s145]
                %273 = vst [vmem:[%s153 + $0xec] sm:%s145] %v272
                %v274 = vld [vmem:[%s152 + $0x1c8] sm:%s145]
                %275 = vst [vmem:[%s153 + $0xf0] sm:%s145] %v274
                %v276 = vld [vmem:[%s152 + $0x1cc] sm:%s145]
                %277 = vst [vmem:[%s153 + $0xf4] sm:%s145] %v276
                %v278 = vld [vmem:[%s152 + $0x1d0] sm:%s145]
                %279 = vst [vmem:[%s153 + $0xf8] sm:%s145] %v278
                %v280 = vld [vmem:[%s152 + $0x1d4] sm:%s145]
                %281 = vst [vmem:[%s153 + $0xfc] sm:%s145] %v280
                %v282 = vld [vmem:[%s152 + $0x1d8] sm:%s145]
                %283 = vst [vmem:[%s153 + $0x100] sm:%s145] %v282
                %v284 = vld [vmem:[%s152 + $0x1dc] sm:%s145]
                %285 = vst [vmem:[%s153 + $0x104] sm:%s145] %v284
                %v286 = vld [vmem:[%s152 + $0x1e0] sm:%s145]
                %287 = vst [vmem:[%s153 + $0x108] sm:%s145] %v286
                %v288 = vld [vmem:[%s152 + $0x1e4] sm:%s145]
                %289 = vst [vmem:[%s153 + $0x10c] sm:%s145] %v288
                %v290 = vld [vmem:[%s152 + $0x1e8] sm:%s145]
                %291 = vst [vmem:[%s153 + $0x110] sm:%s145] %v290
                %v292 = vld [vmem:[%s152 + $0x1ec] sm:%s145]
                %293 = vst [vmem:[%s153 + $0x114] sm:%s145] %v292
                %v294 = vld [vmem:[%s152 + $0x1f0] sm:%s145]
                %295 = vst [vmem:[%s153 + $0x118] sm:%s145] %v294
                %v296 = vld [vmem:[%s152 + $0x1f4] sm:%s145]
                %297 = vst [vmem:[%s153 + $0x11c] sm:%s145] %v296
              $region45: #{mnist_convnet_forward.3} parent=39 // loop_footer
                %s151 = sadd.s32 1, %s147
              $region46: #{mnist_convnet_forward.3} parent=39 // loop_footer_branch
                %146 = sbr.rel target = $region42
              $region47: #{mnist_convnet_forward.3} parent=39 // loop_exit
                _
            $region40: #{mnist_convnet_forward.3} parent=31 // pred_fallthru
              _
          $region32: #{mnist_convnet_forward.3} parent=27 // pred_fallthru
            _
          %462 = vnop
        $region28: #{mnist_convnet_forward.3} parent=23 // pred_fallthru
          _
      $region24: #{mnist_convnet_forward.3} parent=5 // pred_fallthru
        _
      %p463 = scmp.le.s32.totalorder 1, %s9
      %p464 = scmp.lt.s32.totalorder %s9, 3
      %p465 = pnand %p463, %p464
      %p466 = pneg %p465
      // Predicated region
      $region66: #{mnist_convnet_forward.3} parent=5 // pred_check
        _
      $region67: #{mnist_convnet_forward.3} parent=5 // pred_check_branch
        %468 = sbr.rel (%p465) target = $region69
      $region68: #{mnist_convnet_forward.3} parent=5 // pred_region
        %s469 = ssub.s32 %s9, 1
        %s470 = sand.u32 %s22, 1
        %s471 = sand.u32 %s22, 1
        %s472 = smul.addr %s471, 288
        %s473 = scalar_lea.vmem [#allocation2], %s472
        // Predicated region
        $region70: #{mnist_convnet_forward.3} parent=68 // pred_check
          %p474 = pneg %p35
        $region71: #{mnist_convnet_forward.3} parent=68 // pred_check_branch
          %476 = sbr.rel (%p474) target = $region73
        $region72: #{mnist_convnet_forward.3} parent=68 // pred_region
          _
        $region73: #{mnist_convnet_forward.3} parent=68 // pred_fallthru
          _
        %s477 = sand.u32 %s22, 1
        %s478 = sand.u32 %s22, 1
        %s479 = smul.addr %s478, 288
        %s480 = scalar_lea.vmem [#allocation2], %s479
        %p481 = pneg %p35
        %p482 = pneg %p32
        %p483 = pneg %p56
        %p484 = pneg %p53
        %p485 = pneg %p77
        %p486 = pneg %p74
        %p487 = pneg %p103
        %p488 = pneg %p100
        %s489 = smul.u32 18, %s14
        %p490 = scmp.lt.s32.totalorder %s489, 35
        %s491 = scalar_select %p490, %s489, 35
        %s492 = smul.addr %s491, 4
        %s493 = scalar_lea.vmem %s3, %s492
        %s494 = smul.u32 18, %s14
        %s495 = smul.u32 18, %s14
        %p496 = scmp.lt.s32.totalorder %s495, 35
        %s497 = scalar_select %p496, %s495, 35
        %s498 = smul.addr %s497, 4
        %s499 = scalar_lea.vmem %s3, %s498
        %s500 = smul.u32 18, %s14
        %v502 = vld [vmem:[%s473] sm:$0xf]
        %v503 = vld [vmem:[%s473 + $0x4] sm:$0xf]
        %v504 = vld [vmem:[%s473 + $0x8] sm:$0xf]
        %v505 = vld [vmem:[%s473 + $0xc] sm:$0xf]
        %v506 = vld [vmem:[%s473 + $0x10] sm:$0xf]
        %v507 = vld [vmem:[%s473 + $0x14] sm:$0xf]
        %v508 = vld [vmem:[%s473 + $0x18] sm:$0xf]
        %v509 = vld [vmem:[%s473 + $0x1c] sm:$0xf]
        %v510 = vld [vmem:[%s473 + $0x20] sm:$0xf]
        %v511 = vld [vmem:[%s473 + $0x24] sm:$0xf]
        %v512 = vld [vmem:[%s473 + $0x28] sm:$0xf]
        %v513 = vld [vmem:[%s473 + $0x2c] sm:$0xf]
        %v514 = vld [vmem:[%s473 + $0x30] sm:$0xf]
        %v515 = vld [vmem:[%s473 + $0x34] sm:$0xf]
        %v516 = vld [vmem:[%s473 + $0x38] sm:$0xf]
        %v517 = vld [vmem:[%s473 + $0x3c] sm:$0xf]
        %v518 = vld [vmem:[%s473 + $0x40] sm:$0xf]
        %v519 = vld [vmem:[%s473 + $0x44] sm:$0xf]
        %v520 = vld [vmem:[%s473 + $0x48] sm:$0xf]
        %v521 = vld [vmem:[%s473 + $0x4c] sm:$0xf]
        %v522 = vld [vmem:[%s473 + $0x50] sm:$0xf]
        %v523 = vld [vmem:[%s473 + $0x54] sm:$0xf]
        %v524 = vld [vmem:[%s473 + $0x58] sm:$0xf]
        %v525 = vld [vmem:[%s473 + $0x5c] sm:$0xf]
        %v526 = vld [vmem:[%s473 + $0x60] sm:$0xf]
        %v527 = vld [vmem:[%s473 + $0x64] sm:$0xf]
        %v528 = vld [vmem:[%s473 + $0x68] sm:$0xf]
        %v529 = vld [vmem:[%s473 + $0x6c] sm:$0xf]
        %v530 = vld [vmem:[%s473 + $0x70] sm:$0xf]
        %v531 = vld [vmem:[%s473 + $0x74] sm:$0xf]
        %v532 = vld [vmem:[%s473 + $0x78] sm:$0xf]
        %v533 = vld [vmem:[%s473 + $0x7c] sm:$0xf]
        %v534 = vld [vmem:[%s473 + $0x80] sm:$0xf]
        %v535 = vld [vmem:[%s473 + $0x84] sm:$0xf]
        %v536 = vld [vmem:[%s473 + $0x88] sm:$0xf]
        %v537 = vld [vmem:[%s473 + $0x8c] sm:$0xf]
        %v538 = vld [vmem:[%s473 + $0x90] sm:$0xf]
        %v539 = vld [vmem:[%s473 + $0x94] sm:$0xf]
        %v540 = vld [vmem:[%s473 + $0x98] sm:$0xf]
        %v541 = vld [vmem:[%s473 + $0x9c] sm:$0xf]
        %v542 = vld [vmem:[%s473 + $0xa0] sm:$0xf]
        %v543 = vld [vmem:[%s473 + $0xa4] sm:$0xf]
        %v544 = vld [vmem:[%s473 + $0xa8] sm:$0xf]
        %v545 = vld [vmem:[%s473 + $0xac] sm:$0xf]
        %v546 = vld [vmem:[%s473 + $0xb0] sm:$0xf]
        %v547 = vld [vmem:[%s473 + $0xb4] sm:$0xf]
        %v548 = vld [vmem:[%s473 + $0xb8] sm:$0xf]
        %v549 = vld [vmem:[%s473 + $0xbc] sm:$0xf]
        %v550 = vld [vmem:[%s473 + $0xc0] sm:$0xf]
        %v551 = vld [vmem:[%s473 + $0xc4] sm:$0xf]
        %v552 = vld [vmem:[%s473 + $0xc8] sm:$0xf]
        %v553 = vld [vmem:[%s473 + $0xcc] sm:$0xf]
        %v554 = vld [vmem:[%s473 + $0xd0] sm:$0xf]
        %v555 = vld [vmem:[%s473 + $0xd4] sm:$0xf]
        %v556 = vld [vmem:[%s473 + $0xd8] sm:$0xf]
        %v557 = vld [vmem:[%s473 + $0xdc] sm:$0xf]
        %v558 = vld [vmem:[%s473 + $0xe0] sm:$0xf]
        %v559 = vld [vmem:[%s473 + $0xe4] sm:$0xf]
        %v560 = vld [vmem:[%s473 + $0xe8] sm:$0xf]
        %v561 = vld [vmem:[%s473 + $0xec] sm:$0xf]
        %v562 = vld [vmem:[%s473 + $0xf0] sm:$0xf]
        %v563 = vld [vmem:[%s473 + $0xf4] sm:$0xf]
        %v564 = vld [vmem:[%s473 + $0xf8] sm:$0xf]
        %v565 = vld [vmem:[%s473 + $0xfc] sm:$0xf]
        %v566 = vld [vmem:[%s473 + $0x100] sm:$0xf]
        %v567 = vld [vmem:[%s473 + $0x104] sm:$0xf]
        %v568 = vld [vmem:[%s473 + $0x108] sm:$0xf]
        %v569 = vld [vmem:[%s473 + $0x10c] sm:$0xf]
        %v570 = vld [vmem:[%s473 + $0x110] sm:$0xf]
        %v571 = vld [vmem:[%s473 + $0x114] sm:$0xf]
        %v572 = vld [vmem:[%s473 + $0x118] sm:$0xf]
        %v573 = vld [vmem:[%s473 + $0x11c] sm:$0xf]
        %v574 = vld [vmem:[%s1] sm:$0xf]
        %v575 = vld [vmem:[%s1 + $0x4] sm:$0xf]
        %v576 = vld [vmem:[%s1 + $0x8] sm:$0xf]
        %v577 = vld [vmem:[%s1 + $0xc] sm:$0xf]
        %v650 = vunpack.c.l.b16 %v502
        %v651 = vunpack.c.l.b16 %v503
        %v652 = vunpack.c.l.b16 %v504
        %v653 = vunpack.c.l.b16 %v505
        %v654 = vunpack.c.l.b16 %v506
        %v655 = vunpack.c.l.b16 %v507
        %v656 = vunpack.c.l.b16 %v508
        %v657 = vunpack.c.l.b16 %v509
        %v658 = vunpack.c.l.b16 %v510
        %v659 = vunpack.c.l.b16 %v511
        %v660 = vunpack.c.l.b16 %v512
        %v661 = vunpack.c.l.b16 %v513
        %v662 = vunpack.c.l.b16 %v514
        %v663 = vunpack.c.l.b16 %v515
        %v664 = vunpack.c.l.b16 %v516
        %v665 = vunpack.c.l.b16 %v517
        %v666 = vunpack.c.l.b16 %v518
        %v667 = vunpack.c.l.b16 %v519
        %v668 = vunpack.c.l.b16 %v520
        %v669 = vunpack.c.l.b16 %v521
        %v670 = vunpack.c.l.b16 %v522
        %v671 = vunpack.c.l.b16 %v523
        %v672 = vunpack.c.l.b16 %v524
        %v673 = vunpack.c.l.b16 %v525
        %v674 = vunpack.c.l.b16 %v526
        %v675 = vunpack.c.l.b16 %v527
        %v676 = vunpack.c.l.b16 %v528
        %v677 = vunpack.c.l.b16 %v529
        %v678 = vunpack.c.l.b16 %v530
        %v679 = vunpack.c.l.b16 %v531
        %v680 = vunpack.c.l.b16 %v532
        %v681 = vunpack.c.l.b16 %v533
        %v682 = vunpack.c.l.b16 %v534
        %v683 = vunpack.c.l.b16 %v535
        %v684 = vunpack.c.l.b16 %v536
        %v685 = vunpack.c.l.b16 %v537
        %v686 = vunpack.c.l.b16 %v538
        %v687 = vunpack.c.l.b16 %v539
        %v688 = vunpack.c.l.b16 %v540
        %v689 = vunpack.c.l.b16 %v541
        %v690 = vunpack.c.l.b16 %v542
        %v691 = vunpack.c.l.b16 %v543
        %v692 = vunpack.c.l.b16 %v544
        %v693 = vunpack.c.l.b16 %v545
        %v694 = vunpack.c.l.b16 %v546
        %v695 = vunpack.c.l.b16 %v547
        %v696 = vunpack.c.l.b16 %v548
        %v697 = vunpack.c.l.b16 %v549
        %v698 = vunpack.c.l.b16 %v550
        %v699 = vunpack.c.l.b16 %v551
        %v700 = vunpack.c.l.b16 %v552
        %v701 = vunpack.c.l.b16 %v553
        %v702 = vunpack.c.l.b16 %v554
        %v703 = vunpack.c.l.b16 %v555
        %v704 = vunpack.c.l.b16 %v556
        %v705 = vunpack.c.l.b16 %v557
        %v706 = vunpack.c.l.b16 %v558
        %v707 = vunpack.c.l.b16 %v559
        %v708 = vunpack.c.l.b16 %v560
        %v709 = vunpack.c.l.b16 %v561
        %v710 = vunpack.c.l.b16 %v562
        %v711 = vunpack.c.l.b16 %v563
        %v712 = vunpack.c.l.b16 %v564
        %v713 = vunpack.c.l.b16 %v565
        %v714 = vunpack.c.l.b16 %v566
        %v715 = vunpack.c.l.b16 %v567
        %v716 = vunpack.c.l.b16 %v568
        %v717 = vunpack.c.l.b16 %v569
        %v718 = vunpack.c.l.b16 %v570
        %v719 = vunpack.c.l.b16 %v571
        %v720 = vunpack.c.l.b16 %v572
        %v721 = vunpack.c.l.b16 %v573
        %v722 = vpack.c.b16 %v651, %v650
        %v723 = vpack.c.b16 %v653, %v652
        %v724 = vpack.c.b16 %v655, %v654
        %v725 = vpack.c.b16 %v657, %v656
        %v726 = vpack.c.b16 %v659, %v658
        %v727 = vpack.c.b16 %v661, %v660
        %v728 = vpack.c.b16 %v663, %v662
        %v729 = vpack.c.b16 %v665, %v664
        %v730 = vpack.c.b16 %v667, %v666
        %v731 = vpack.c.b16 %v669, %v668
        %v732 = vpack.c.b16 %v671, %v670
        %v733 = vpack.c.b16 %v673, %v672
        %v734 = vpack.c.b16 %v675, %v674
        %v735 = vpack.c.b16 %v677, %v676
        %v736 = vpack.c.b16 %v679, %v678
        %v737 = vpack.c.b16 %v681, %v680
        %v738 = vpack.c.b16 %v683, %v682
        %v739 = vpack.c.b16 %v685, %v684
        %v740 = vpack.c.b16 %v687, %v686
        %v741 = vpack.c.b16 %v689, %v688
        %v742 = vpack.c.b16 %v691, %v690
        %v743 = vpack.c.b16 %v693, %v692
        %v744 = vpack.c.b16 %v695, %v694
        %v745 = vpack.c.b16 %v697, %v696
        %v746 = vpack.c.b16 %v699, %v698
        %v747 = vpack.c.b16 %v701, %v700
        %v748 = vpack.c.b16 %v703, %v702
        %v749 = vpack.c.b16 %v705, %v704
        %v750 = vpack.c.b16 %v707, %v706
        %v751 = vpack.c.b16 %v709, %v708
        %v752 = vpack.c.b16 %v711, %v710
        %v753 = vpack.c.b16 %v713, %v712
        %v754 = vpack.c.b16 %v715, %v714
        %v755 = vpack.c.b16 %v717, %v716
        %v756 = vpack.c.b16 %v719, %v718
        %v757 = vpack.c.b16 %v721, %v720
        %v762 = vunpack.c.l.b16 %v574
        %v763 = vunpack.c.l.b16 %v575
        %v764 = vunpack.c.l.b16 %v576
        %v765 = vunpack.c.l.b16 %v577
        %v766 = vpack.c.b16 %v763, %v762
        %v767 = vpack.c.b16 %v765, %v764
        %vm770 = vcmask 261120
        %v772 = vsel %vm770, %v722, 0
        %v775 = vsel %vm770, %v723, 0
        %v778 = vsel %vm770, %v724, 0
        %v781 = vsel %vm770, %v725, 0
        %v784 = vsel %vm770, %v726, 0
        %v787 = vsel %vm770, %v727, 0
        %v790 = vsel %vm770, %v728, 0
        %v793 = vsel %vm770, %v729, 0
        %v796 = vsel %vm770, %v730, 0
        %v799 = vsel %vm770, %v731, 0
        %v802 = vsel %vm770, %v732, 0
        %v805 = vsel %vm770, %v733, 0
        %v808 = vsel %vm770, %v734, 0
        %v811 = vsel %vm770, %v735, 0
        %v814 = vsel %vm770, %v736, 0
        %v817 = vsel %vm770, %v737, 0
        %v820 = vsel %vm770, %v738, 0
        %v823 = vsel %vm770, %v739, 0
        %v826 = vsel %vm770, %v740, 0
        %v829 = vsel %vm770, %v741, 0
        %v832 = vsel %vm770, %v742, 0
        %v835 = vsel %vm770, %v743, 0
        %v838 = vsel %vm770, %v744, 0
        %v841 = vsel %vm770, %v745, 0
        %v844 = vsel %vm770, %v746, 0
        %v847 = vsel %vm770, %v747, 0
        %v850 = vsel %vm770, %v748, 0
        %v853 = vsel %vm770, %v749, 0
        %v856 = vsel %vm770, %v750, 0
        %v859 = vsel %vm770, %v751, 0
        %v862 = vsel %vm770, %v752, 0
        %v865 = vsel %vm770, %v753, 0
        %v868 = vsel %vm770, %v754, 0
        %v871 = vsel %vm770, %v755, 0
        %v874 = vsel %vm770, %v756, 0
        %v877 = vsel %vm770, %v757, 0
        %879 = vmatprep.subr.bf16.mxu0 0
        %880 = vmatpush1.bf16.msra.mxu0 0
        %881 = vmatprep.subr.bf16.mxu0 0
        %882 = vmatpush1.bf16.msra.mxu0 0
        %883 = vmatprep.subr.bf16.mxu0 0
        %884 = vmatpush1.bf16.msra.mxu0 0
        %885 = vmatprep.subr.bf16.mxu0 0
        %886 = vmatpush1.bf16.msra.mxu0 0
        %887 = vmatprep.subr.bf16.mxu0 0
        %888 = vmatpush1.bf16.msra.mxu0 0
        %889 = vmatprep.subr.bf16.mxu0 0
        %890 = vmatpush1.bf16.msra.mxu0 0
        %891 = vmatprep.subr.bf16.mxu0 0
        %892 = vmatpush1.bf16.msra.mxu0 %v767
        %893 = vmatprep.subr.bf16.mxu0 0
        %894 = vmatpush1.bf16.msra.mxu0 %v766
        %895 = vmatprep.subr.bf16.mxu0 0
        %896 = vmatpush2.bf16.msra.mxu0 0
        %897 = vmatprep.subr.bf16.mxu0 0
        %898 = vmatpush2.bf16.msra.mxu0 0
        %899 = vmatprep.subr.bf16.mxu0 0
        %900 = vmatpush2.bf16.msra.mxu0 0
        %901 = vmatprep.subr.bf16.mxu0 0
        %902 = vmatpush2.bf16.msra.mxu0 0
        %903 = vmatprep.subr.bf16.mxu0 0
        %904 = vmatpush2.bf16.msra.mxu0 0
        %905 = vmatprep.subr.bf16.mxu0 0
        %906 = vmatpush2.bf16.msra.mxu0 0
        %907 = vmatprep.subr.bf16.mxu0 0
        %908 = vmatpush2.bf16.msra.mxu0 0
        %909 = vmatprep.subr.bf16.mxu0 0
        %910 = vmatpush2.bf16.msra.mxu0 0
        %911 = vmatprep.mubr.bf16.mxu0 0
        %912 = vmatmul.mubr.bf16.gmra.mxu0 %v772
        %v913 = vpop.f32.mrf.mxu0
        %v914 = vadd.f32 0.0, %v913
        %v915 = vpop.f32.mrf.mxu0
        %v916 = vpop.f32.mrf.mxu0
        %v917 = vadd.f32 0.0, %v916
        %v918 = vpop.f32.mrf.mxu0
        %919 = vmatprep.mubr.bf16.mxu0 0
        %920 = vmatmul.mubr.bf16.gmra.mxu0 %v775
        %v921 = vpop.f32.mrf.mxu0
        %v922 = vadd.f32 0.0, %v921
        %v923 = vpop.f32.mrf.mxu0
        %v924 = vpop.f32.mrf.mxu0
        %v925 = vadd.f32 0.0, %v924
        %v926 = vpop.f32.mrf.mxu0
        %927 = vmatprep.mubr.bf16.mxu0 0
        %928 = vmatmul.mubr.bf16.gmra.mxu0 %v778
        %v929 = vpop.f32.mrf.mxu0
        %v930 = vadd.f32 0.0, %v929
        %v931 = vpop.f32.mrf.mxu0
        %v932 = vpop.f32.mrf.mxu0
        %v933 = vadd.f32 0.0, %v932
        %v934 = vpop.f32.mrf.mxu0
        %935 = vmatprep.mubr.bf16.mxu0 0
        %936 = vmatmul.mubr.bf16.gmra.mxu0 %v781
        %v937 = vpop.f32.mrf.mxu0
        %v938 = vadd.f32 0.0, %v937
        %v939 = vpop.f32.mrf.mxu0
        %v940 = vpop.f32.mrf.mxu0
        %v941 = vadd.f32 0.0, %v940
        %v942 = vpop.f32.mrf.mxu0
        %943 = vmatprep.mubr.bf16.mxu0 0
        %944 = vmatmul.mubr.bf16.gmra.mxu0 %v784
        %v945 = vpop.f32.mrf.mxu0
        %v946 = vadd.f32 0.0, %v945
        %v947 = vpop.f32.mrf.mxu0
        %v948 = vpop.f32.mrf.mxu0
        %v949 = vadd.f32 0.0, %v948
        %v950 = vpop.f32.mrf.mxu0
        %951 = vmatprep.mubr.bf16.mxu0 0
        %952 = vmatmul.mubr.bf16.gmra.mxu0 %v787
        %v953 = vpop.f32.mrf.mxu0
        %v954 = vadd.f32 0.0, %v953
        %v955 = vpop.f32.mrf.mxu0
        %v956 = vpop.f32.mrf.mxu0
        %v957 = vadd.f32 0.0, %v956
        %v958 = vpop.f32.mrf.mxu0
        %959 = vmatprep.mubr.bf16.mxu0 0
        %960 = vmatmul.mubr.bf16.gmra.mxu0 %v790
        %v961 = vpop.f32.mrf.mxu0
        %v962 = vadd.f32 0.0, %v961
        %v963 = vpop.f32.mrf.mxu0
        %v964 = vpop.f32.mrf.mxu0
        %v965 = vadd.f32 0.0, %v964
        %v966 = vpop.f32.mrf.mxu0
        %967 = vmatprep.mubr.bf16.mxu0 0
        %968 = vmatmul.mubr.bf16.gmra.mxu0 %v793
        %v969 = vpop.f32.mrf.mxu0
        %v970 = vadd.f32 0.0, %v969
        %v971 = vpop.f32.mrf.mxu0
        %v972 = vpop.f32.mrf.mxu0
        %v973 = vadd.f32 0.0, %v972
        %v974 = vpop.f32.mrf.mxu0
        %975 = vmatprep.mubr.bf16.mxu0 0
        %976 = vmatmul.mubr.bf16.gmra.mxu0 %v796
        %v977 = vpop.f32.mrf.mxu0
        %v978 = vadd.f32 0.0, %v977
        %v979 = vpop.f32.mrf.mxu0
        %v980 = vpop.f32.mrf.mxu0
        %v981 = vadd.f32 0.0, %v980
        %v982 = vpop.f32.mrf.mxu0
        %983 = vmatprep.mubr.bf16.mxu0 0
        %984 = vmatmul.mubr.bf16.gmra.mxu0 %v799
        %v985 = vpop.f32.mrf.mxu0
        %v986 = vadd.f32 0.0, %v985
        %v987 = vpop.f32.mrf.mxu0
        %v988 = vpop.f32.mrf.mxu0
        %v989 = vadd.f32 0.0, %v988
        %v990 = vpop.f32.mrf.mxu0
        %991 = vmatprep.mubr.bf16.mxu0 0
        %992 = vmatmul.mubr.bf16.gmra.mxu0 %v802
        %v993 = vpop.f32.mrf.mxu0
        %v994 = vadd.f32 0.0, %v993
        %v995 = vpop.f32.mrf.mxu0
        %v996 = vpop.f32.mrf.mxu0
        %v997 = vadd.f32 0.0, %v996
        %v998 = vpop.f32.mrf.mxu0
        %999 = vmatprep.mubr.bf16.mxu0 0
        %1000 = vmatmul.mubr.bf16.gmra.mxu0 %v805
        %v1001 = vpop.f32.mrf.mxu0
        %v1002 = vadd.f32 0.0, %v1001
        %v1003 = vpop.f32.mrf.mxu0
        %v1004 = vpop.f32.mrf.mxu0
        %v1005 = vadd.f32 0.0, %v1004
        %v1006 = vpop.f32.mrf.mxu0
        %1007 = vmatprep.mubr.bf16.mxu0 0
        %1008 = vmatmul.mubr.bf16.gmra.mxu0 %v808
        %v1009 = vpop.f32.mrf.mxu0
        %v1010 = vadd.f32 0.0, %v1009
        %v1011 = vpop.f32.mrf.mxu0
        %v1012 = vpop.f32.mrf.mxu0
        %v1013 = vadd.f32 0.0, %v1012
        %v1014 = vpop.f32.mrf.mxu0
        %1015 = vmatprep.mubr.bf16.mxu0 0
        %1016 = vmatmul.mubr.bf16.gmra.mxu0 %v811
        %v1017 = vpop.f32.mrf.mxu0
        %v1018 = vadd.f32 0.0, %v1017
        %v1019 = vpop.f32.mrf.mxu0
        %v1020 = vpop.f32.mrf.mxu0
        %v1021 = vadd.f32 0.0, %v1020
        %v1022 = vpop.f32.mrf.mxu0
        %1023 = vmatprep.mubr.bf16.mxu0 0
        %1024 = vmatmul.mubr.bf16.gmra.mxu0 %v814
        %v1025 = vpop.f32.mrf.mxu0
        %v1026 = vadd.f32 0.0, %v1025
        %v1027 = vpop.f32.mrf.mxu0
        %v1028 = vpop.f32.mrf.mxu0
        %v1029 = vadd.f32 0.0, %v1028
        %v1030 = vpop.f32.mrf.mxu0
        %1031 = vmatprep.mubr.bf16.mxu0 0
        %1032 = vmatmul.mubr.bf16.gmra.mxu0 %v817
        %v1033 = vpop.f32.mrf.mxu0
        %v1034 = vadd.f32 0.0, %v1033
        %v1035 = vpop.f32.mrf.mxu0
        %v1036 = vpop.f32.mrf.mxu0
        %v1037 = vadd.f32 0.0, %v1036
        %v1038 = vpop.f32.mrf.mxu0
        %1039 = vmatprep.mubr.bf16.mxu0 0
        %1040 = vmatmul.mubr.bf16.gmra.mxu0 %v820
        %v1041 = vpop.f32.mrf.mxu0
        %v1042 = vadd.f32 0.0, %v1041
        %v1043 = vpop.f32.mrf.mxu0
        %v1044 = vpop.f32.mrf.mxu0
        %v1045 = vadd.f32 0.0, %v1044
        %v1046 = vpop.f32.mrf.mxu0
        %1047 = vmatprep.mubr.bf16.mxu0 0
        %1048 = vmatmul.mubr.bf16.gmra.mxu0 %v823
        %v1049 = vpop.f32.mrf.mxu0
        %v1050 = vadd.f32 0.0, %v1049
        %v1051 = vpop.f32.mrf.mxu0
        %v1052 = vpop.f32.mrf.mxu0
        %v1053 = vadd.f32 0.0, %v1052
        %v1054 = vpop.f32.mrf.mxu0
        %1055 = vmatprep.mubr.bf16.mxu0 0
        %1056 = vmatmul.mubr.bf16.gmra.mxu0 %v826
        %v1057 = vpop.f32.mrf.mxu0
        %v1058 = vadd.f32 0.0, %v1057
        %v1059 = vpop.f32.mrf.mxu0
        %v1060 = vpop.f32.mrf.mxu0
        %v1061 = vadd.f32 0.0, %v1060
        %v1062 = vpop.f32.mrf.mxu0
        %1063 = vmatprep.mubr.bf16.mxu0 0
        %1064 = vmatmul.mubr.bf16.gmra.mxu0 %v829
        %v1065 = vpop.f32.mrf.mxu0
        %v1066 = vadd.f32 0.0, %v1065
        %v1067 = vpop.f32.mrf.mxu0
        %v1068 = vpop.f32.mrf.mxu0
        %v1069 = vadd.f32 0.0, %v1068
        %v1070 = vpop.f32.mrf.mxu0
        %1071 = vmatprep.mubr.bf16.mxu0 0
        %1072 = vmatmul.mubr.bf16.gmra.mxu0 %v832
        %v1073 = vpop.f32.mrf.mxu0
        %v1074 = vadd.f32 0.0, %v1073
        %v1075 = vpop.f32.mrf.mxu0
        %v1076 = vpop.f32.mrf.mxu0
        %v1077 = vadd.f32 0.0, %v1076
        %v1078 = vpop.f32.mrf.mxu0
        %1079 = vmatprep.mubr.bf16.mxu0 0
        %1080 = vmatmul.mubr.bf16.gmra.mxu0 %v835
        %v1081 = vpop.f32.mrf.mxu0
        %v1082 = vadd.f32 0.0, %v1081
        %v1083 = vpop.f32.mrf.mxu0
        %v1084 = vpop.f32.mrf.mxu0
        %v1085 = vadd.f32 0.0, %v1084
        %v1086 = vpop.f32.mrf.mxu0
        %1087 = vmatprep.mubr.bf16.mxu0 0
        %1088 = vmatmul.mubr.bf16.gmra.mxu0 %v838
        %v1089 = vpop.f32.mrf.mxu0
        %v1090 = vadd.f32 0.0, %v1089
        %v1091 = vpop.f32.mrf.mxu0
        %v1092 = vpop.f32.mrf.mxu0
        %v1093 = vadd.f32 0.0, %v1092
        %v1094 = vpop.f32.mrf.mxu0
        %1095 = vmatprep.mubr.bf16.mxu0 0
        %1096 = vmatmul.mubr.bf16.gmra.mxu0 %v841
        %v1097 = vpop.f32.mrf.mxu0
        %v1098 = vadd.f32 0.0, %v1097
        %v1099 = vpop.f32.mrf.mxu0
        %v1100 = vpop.f32.mrf.mxu0
        %v1101 = vadd.f32 0.0, %v1100
        %v1102 = vpop.f32.mrf.mxu0
        %1103 = vmatprep.mubr.bf16.mxu0 0
        %1104 = vmatmul.mubr.bf16.gmra.mxu0 %v844
        %v1105 = vpop.f32.mrf.mxu0
        %v1106 = vadd.f32 0.0, %v1105
        %v1107 = vpop.f32.mrf.mxu0
        %v1108 = vpop.f32.mrf.mxu0
        %v1109 = vadd.f32 0.0, %v1108
        %v1110 = vpop.f32.mrf.mxu0
        %1111 = vmatprep.mubr.bf16.mxu0 0
        %1112 = vmatmul.mubr.bf16.gmra.mxu0 %v847
        %v1113 = vpop.f32.mrf.mxu0
        %v1114 = vadd.f32 0.0, %v1113
        %v1115 = vpop.f32.mrf.mxu0
        %v1116 = vpop.f32.mrf.mxu0
        %v1117 = vadd.f32 0.0, %v1116
        %v1118 = vpop.f32.mrf.mxu0
        %1119 = vmatprep.mubr.bf16.mxu0 0
        %1120 = vmatmul.mubr.bf16.gmra.mxu0 %v850
        %v1121 = vpop.f32.mrf.mxu0
        %v1122 = vadd.f32 0.0, %v1121
        %v1123 = vpop.f32.mrf.mxu0
        %v1124 = vpop.f32.mrf.mxu0
        %v1125 = vadd.f32 0.0, %v1124
        %v1126 = vpop.f32.mrf.mxu0
        %1127 = vmatprep.mubr.bf16.mxu0 0
        %1128 = vmatmul.mubr.bf16.gmra.mxu0 %v853
        %v1129 = vpop.f32.mrf.mxu0
        %v1130 = vadd.f32 0.0, %v1129
        %v1131 = vpop.f32.mrf.mxu0
        %v1132 = vpop.f32.mrf.mxu0
        %v1133 = vadd.f32 0.0, %v1132
        %v1134 = vpop.f32.mrf.mxu0
        %1135 = vmatprep.mubr.bf16.mxu0 0
        %1136 = vmatmul.mubr.bf16.gmra.mxu0 %v856
        %v1137 = vpop.f32.mrf.mxu0
        %v1138 = vadd.f32 0.0, %v1137
        %v1139 = vpop.f32.mrf.mxu0
        %v1140 = vpop.f32.mrf.mxu0
        %v1141 = vadd.f32 0.0, %v1140
        %v1142 = vpop.f32.mrf.mxu0
        %1143 = vmatprep.mubr.bf16.mxu0 0
        %1144 = vmatmul.mubr.bf16.gmra.mxu0 %v859
        %v1145 = vpop.f32.mrf.mxu0
        %v1146 = vadd.f32 0.0, %v1145
        %v1147 = vpop.f32.mrf.mxu0
        %v1148 = vpop.f32.mrf.mxu0
        %v1149 = vadd.f32 0.0, %v1148
        %v1150 = vpop.f32.mrf.mxu0
        %1151 = vmatprep.mubr.bf16.mxu0 0
        %1152 = vmatmul.mubr.bf16.gmra.mxu0 %v862
        %v1153 = vpop.f32.mrf.mxu0
        %v1154 = vadd.f32 0.0, %v1153
        %v1155 = vpop.f32.mrf.mxu0
        %v1156 = vpop.f32.mrf.mxu0
        %v1157 = vadd.f32 0.0, %v1156
        %v1158 = vpop.f32.mrf.mxu0
        %1159 = vmatprep.mubr.bf16.mxu0 0
        %1160 = vmatmul.mubr.bf16.gmra.mxu0 %v865
        %v1161 = vpop.f32.mrf.mxu0
        %v1162 = vadd.f32 0.0, %v1161
        %v1163 = vpop.f32.mrf.mxu0
        %v1164 = vpop.f32.mrf.mxu0
        %v1165 = vadd.f32 0.0, %v1164
        %v1166 = vpop.f32.mrf.mxu0
        %1167 = vmatprep.mubr.bf16.mxu0 0
        %1168 = vmatmul.mubr.bf16.gmra.mxu0 %v868
        %v1169 = vpop.f32.mrf.mxu0
        %v1170 = vadd.f32 0.0, %v1169
        %v1171 = vpop.f32.mrf.mxu0
        %v1172 = vpop.f32.mrf.mxu0
        %v1173 = vadd.f32 0.0, %v1172
        %v1174 = vpop.f32.mrf.mxu0
        %1175 = vmatprep.mubr.bf16.mxu0 0
        %1176 = vmatmul.mubr.bf16.gmra.mxu0 %v871
        %v1177 = vpop.f32.mrf.mxu0
        %v1178 = vadd.f32 0.0, %v1177
        %v1179 = vpop.f32.mrf.mxu0
        %v1180 = vpop.f32.mrf.mxu0
        %v1181 = vadd.f32 0.0, %v1180
        %v1182 = vpop.f32.mrf.mxu0
        %1183 = vmatprep.mubr.bf16.mxu0 0
        %1184 = vmatmul.mubr.bf16.gmra.mxu0 %v874
        %v1185 = vpop.f32.mrf.mxu0
        %v1186 = vadd.f32 0.0, %v1185
        %v1187 = vpop.f32.mrf.mxu0
        %v1188 = vpop.f32.mrf.mxu0
        %v1189 = vadd.f32 0.0, %v1188
        %v1190 = vpop.f32.mrf.mxu0
        %1191 = vmatprep.mubr.bf16.mxu0 0
        %1192 = vmatmul.mubr.bf16.gmra.mxu0 %v877
        %v1193 = vpop.f32.mrf.mxu0
        %v1194 = vadd.f32 0.0, %v1193
        %v1195 = vpop.f32.mrf.mxu0
        %v1196 = vpop.f32.mrf.mxu0
        %v1197 = vadd.f32 0.0, %v1196
        %v1198 = vpop.f32.mrf.mxu0
        %1199 = vdwg.mxu0
        %v1200 = vmax.f32 %v914, %v986
        %v1201 = vmax.f32 %v917, %v989
        %v1202 = vmax.f32 %v922, %v994
        %v1203 = vmax.f32 %v925, %v997
        %v1204 = vmax.f32 %v930, %v1002
        %v1205 = vmax.f32 %v933, %v1005
        %v1206 = vmax.f32 %v938, %v1010
        %v1207 = vmax.f32 %v941, %v1013
        %v1208 = vmax.f32 %v946, %v1018
        %v1209 = vmax.f32 %v949, %v1021
        %v1210 = vmax.f32 %v954, %v1026
        %v1211 = vmax.f32 %v957, %v1029
        %v1212 = vmax.f32 %v962, %v1034
        %v1213 = vmax.f32 %v965, %v1037
        %v1214 = vmax.f32 %v970, %v1042
        %v1215 = vmax.f32 %v973, %v1045
        %v1216 = vmax.f32 %v978, %v1050
        %v1217 = vmax.f32 %v981, %v1053
        %v1218 = vmax.f32 %v1058, %v1130
        %v1219 = vmax.f32 %v1061, %v1133
        %v1220 = vmax.f32 %v1066, %v1138
        %v1221 = vmax.f32 %v1069, %v1141
        %v1222 = vmax.f32 %v1074, %v1146
        %v1223 = vmax.f32 %v1077, %v1149
        %v1224 = vmax.f32 %v1082, %v1154
        %v1225 = vmax.f32 %v1085, %v1157
        %v1226 = vmax.f32 %v1090, %v1162
        %v1227 = vmax.f32 %v1093, %v1165
        %v1228 = vmax.f32 %v1098, %v1170
        %v1229 = vmax.f32 %v1101, %v1173
        %v1230 = vmax.f32 %v1106, %v1178
        %v1231 = vmax.f32 %v1109, %v1181
        %v1232 = vmax.f32 %v1114, %v1186
        %v1233 = vmax.f32 %v1117, %v1189
        %v1234 = vmax.f32 %v1122, %v1194
        %v1235 = vmax.f32 %v1125, %v1197
        %v1236 = vmax.f32 %v1200, %v1218
        %v1237 = vmax.f32 %v1201, %v1219
        %v1238 = vmax.f32 %v1202, %v1220
        %v1239 = vmax.f32 %v1203, %v1221
        %v1240 = vmax.f32 %v1204, %v1222
        %v1241 = vmax.f32 %v1205, %v1223
        %v1242 = vmax.f32 %v1206, %v1224
        %v1243 = vmax.f32 %v1207, %v1225
        %v1244 = vmax.f32 %v1208, %v1226
        %v1245 = vmax.f32 %v1209, %v1227
        %v1246 = vmax.f32 %v1210, %v1228
        %v1247 = vmax.f32 %v1211, %v1229
        %v1248 = vmax.f32 %v1212, %v1230
        %v1249 = vmax.f32 %v1213, %v1231
        %v1250 = vmax.f32 %v1214, %v1232
        %v1251 = vmax.f32 %v1215, %v1233
        %v1252 = vmax.f32 %v1216, %v1234
        %v1253 = vmax.f32 %v1217, %v1235
        %v1254 = vld [vmem:[%s2] sm:$0x1]
        %v1256 = vlaneseq
        %v1257 = vshrl.u32 %v1256, 7
        %v1258 = vsub.s32 0, %v1257
        %v1259 = vrot.slane %v1254, %v1258
        %v1261 = vadd.f32 %v1236, %v1259
        %v1262 = vadd.f32 %v1237, %v1259
        %v1263 = vadd.f32 %v1238, %v1259
        %v1264 = vadd.f32 %v1239, %v1259
        %v1265 = vadd.f32 %v1240, %v1259
        %v1266 = vadd.f32 %v1241, %v1259
        %v1267 = vadd.f32 %v1242, %v1259
        %v1268 = vadd.f32 %v1243, %v1259
        %v1269 = vadd.f32 %v1244, %v1259
        %v1270 = vadd.f32 %v1245, %v1259
        %v1271 = vadd.f32 %v1246, %v1259
        %v1272 = vadd.f32 %v1247, %v1259
        %v1273 = vadd.f32 %v1248, %v1259
        %v1274 = vadd.f32 %v1249, %v1259
        %v1275 = vadd.f32 %v1250, %v1259
        %v1276 = vadd.f32 %v1251, %v1259
        %v1277 = vadd.f32 %v1252, %v1259
        %v1278 = vadd.f32 %v1253, %v1259
        %v1279 = vmax.f32 %v1261, 0.0
        %v1280 = vmax.f32 %v1262, 0.0
        %v1281 = vmax.f32 %v1263, 0.0
        %v1282 = vmax.f32 %v1264, 0.0
        %v1283 = vmax.f32 %v1265, 0.0
        %v1284 = vmax.f32 %v1266, 0.0
        %v1285 = vmax.f32 %v1267, 0.0
        %v1286 = vmax.f32 %v1268, 0.0
        %v1287 = vmax.f32 %v1269, 0.0
        %v1288 = vmax.f32 %v1270, 0.0
        %v1289 = vmax.f32 %v1271, 0.0
        %v1290 = vmax.f32 %v1272, 0.0
        %v1291 = vmax.f32 %v1273, 0.0
        %v1292 = vmax.f32 %v1274, 0.0
        %v1293 = vmax.f32 %v1275, 0.0
        %v1294 = vmax.f32 %v1276, 0.0
        %v1295 = vmax.f32 %v1277, 0.0
        %v1296 = vmax.f32 %v1278, 0.0
        %v1297 = vpack.c.bf16 %v1280, %v1279
        %v1298 = vpack.c.bf16 %v1282, %v1281
        %v1299 = vpack.c.bf16 %v1284, %v1283
        %v1300 = vpack.c.bf16 %v1286, %v1285
        %v1301 = vpack.c.bf16 %v1288, %v1287
        %v1302 = vpack.c.bf16 %v1290, %v1289
        %v1303 = vpack.c.bf16 %v1292, %v1291
        %v1304 = vpack.c.bf16 %v1294, %v1293
        %v1305 = vpack.c.bf16 %v1296, %v1295
        %v1315 = vunpack.c.l.b16 %v1297
        %v1316 = vunpack.c.h.b16 %v1297
        %v1317 = vunpack.c.l.b16 %v1298
        %v1318 = vunpack.c.h.b16 %v1298
        %v1319 = vunpack.c.l.b16 %v1299
        %v1320 = vunpack.c.h.b16 %v1299
        %v1321 = vunpack.c.l.b16 %v1300
        %v1322 = vunpack.c.h.b16 %v1300
        %v1323 = vunpack.c.l.b16 %v1301
        %v1324 = vunpack.c.h.b16 %v1301
        %v1325 = vunpack.c.l.b16 %v1302
        %v1326 = vunpack.c.h.b16 %v1302
        %v1327 = vunpack.c.l.b16 %v1303
        %v1328 = vunpack.c.h.b16 %v1303
        %v1329 = vunpack.c.l.b16 %v1304
        %v1330 = vunpack.c.h.b16 %v1304
        %v1331 = vunpack.c.l.b16 %v1305
        %v1332 = vunpack.c.h.b16 %v1305
        %v1333 = vpack.c.b16 %v1315, %v1315
        %v1334 = vpack.c.b16 %v1316, %v1316
        %v1335 = vpack.c.b16 %v1317, %v1317
        %v1336 = vpack.c.b16 %v1318, %v1318
        %v1337 = vpack.c.b16 %v1319, %v1319
        %v1338 = vpack.c.b16 %v1320, %v1320
        %v1339 = vpack.c.b16 %v1321, %v1321
        %v1340 = vpack.c.b16 %v1322, %v1322
        %v1341 = vpack.c.b16 %v1323, %v1323
        %v1342 = vpack.c.b16 %v1324, %v1324
        %v1343 = vpack.c.b16 %v1325, %v1325
        %v1344 = vpack.c.b16 %v1326, %v1326
        %v1345 = vpack.c.b16 %v1327, %v1327
        %v1346 = vpack.c.b16 %v1328, %v1328
        %v1347 = vpack.c.b16 %v1329, %v1329
        %v1348 = vpack.c.b16 %v1330, %v1330
        %v1349 = vpack.c.b16 %v1331, %v1331
        %v1350 = vpack.c.b16 %v1332, %v1332
        %vm1369 = vcmask 125952
        %1370 = vst.msk [vmem:[%s499] sm:$0xf] %vm1369, %v1333
        %1371 = vst.msk [vmem:[%s499 + $0x4] sm:$0xf] %vm1369, %v1334
        %1372 = vst.msk [vmem:[%s499 + $0x8] sm:$0xf] %vm1369, %v1335
        %1373 = vst.msk [vmem:[%s499 + $0xc] sm:$0xf] %vm1369, %v1336
        %1374 = vst.msk [vmem:[%s499 + $0x10] sm:$0xf] %vm1369, %v1337
        %1375 = vst.msk [vmem:[%s499 + $0x14] sm:$0xf] %vm1369, %v1338
        %1376 = vst.msk [vmem:[%s499 + $0x18] sm:$0xf] %vm1369, %v1339
        %1377 = vst.msk [vmem:[%s499 + $0x1c] sm:$0xf] %vm1369, %v1340
        %1378 = vst.msk [vmem:[%s499 + $0x20] sm:$0xf] %vm1369, %v1341
        %1379 = vst.msk [vmem:[%s499 + $0x24] sm:$0xf] %vm1369, %v1342
        %1380 = vst.msk [vmem:[%s499 + $0x28] sm:$0xf] %vm1369, %v1343
        %1381 = vst.msk [vmem:[%s499 + $0x2c] sm:$0xf] %vm1369, %v1344
        %1382 = vst.msk [vmem:[%s499 + $0x30] sm:$0xf] %vm1369, %v1345
        %1383 = vst.msk [vmem:[%s499 + $0x34] sm:$0xf] %vm1369, %v1346
        %1384 = vst.msk [vmem:[%s499 + $0x38] sm:$0xf] %vm1369, %v1347
        %1385 = vst.msk [vmem:[%s499 + $0x3c] sm:$0xf] %vm1369, %v1348
        %1386 = vst.msk [vmem:[%s499 + $0x40] sm:$0xf] %vm1369, %v1349
        %1387 = vst.msk [vmem:[%s499 + $0x44] sm:$0xf] %vm1369, %v1350
        %s1388 = smul.u32 18, %s14
        %p1389 = scmp.lt.s32.totalorder %s1388, 35
        %s1390 = scalar_select %p1389, %s1388, 35
        %s1391 = smul.addr %s1390, 4
        %s1392 = scalar_lea.vmem %s3, %s1391
        // Predicated region
        $region74: #{mnist_convnet_forward.3} parent=68 // pred_check
          %p1393 = pneg %p100
        $region75: #{mnist_convnet_forward.3} parent=68 // pred_check_branch
          %1395 = sbr.rel (%p1393) target = $region77
        $region76: #{mnist_convnet_forward.3} parent=68 // pred_region
          %s1396 = smul.u32 18, %s14
        $region77: #{mnist_convnet_forward.3} parent=68 // pred_fallthru
          _
      $region69: #{mnist_convnet_forward.3} parent=5 // pred_fallthru
        _
      %p1397 = scmp.le.s32.totalorder 2, %s9
      // Predicated region
      $region78: #{mnist_convnet_forward.3} parent=5 // pred_check
        %p1398 = pneg %p1397
      $region79: #{mnist_convnet_forward.3} parent=5 // pred_check_branch
        %1400 = sbr.rel (%p1398) target = $region81
      $region80: #{mnist_convnet_forward.3} parent=5 // pred_region
        %s1401 = ssub.s32 %s9, 2
        // Predicated region
        $region82: #{mnist_convnet_forward.3} parent=80 // pred_check
          %p1402 = pneg %p106
        $region83: #{mnist_convnet_forward.3} parent=80 // pred_check_branch
          %1404 = sbr.rel (%p1402) target = $region85
        $region84: #{mnist_convnet_forward.3} parent=80 // pred_region
          %s1405 = smul.u32 18, %s15
          %p1406 = scmp.lt.s32.totalorder %s1405, 35
          %s1407 = scalar_select %p1406, %s1405, 35
          %s1408 = smul.addr %s1407, 4
          %s1409 = scalar_lea.vmem %s3, %s1408
        $region85: #{mnist_convnet_forward.3} parent=80 // pred_fallthru
          _
      $region81: #{mnist_convnet_forward.3} parent=5 // pred_fallthru
        _
    $region6: #{mnist_convnet_forward.3} parent=1 // loop_footer
      %s13 = sadd.s32 1, %s9
    $region7: #{mnist_convnet_forward.3} parent=1 // loop_footer_branch
      %8 = sbr.rel target = $region3
    $region8: #{mnist_convnet_forward.3} parent=1 // loop_exit
      _

// kernel: mnist_convnet_forward.4
$region0: #{mnist_convnet_forward.4}
  #allocation0 [shape = 'u32[]', space=smem, size = 0x4, offset = 0x4, fixed_abs, tag = 'smem constant byte address 0x4 - core index']
  #allocation1 [shape = 'u32[144,128]{1,0:T(1,128)}', space=vmem, size = 0x12000, scoped, tag = 'internal scratch']
  %s0 = inlined_call_operand.vmem [shape: bf16[4,32,256], index: 0, kind: input, shape index: {}]
  %s1 = inlined_call_operand.vmem [shape: bf16[256,32], index: 1, kind: input, shape index: {}]
  %s2 = inlined_call_operand.vmem [shape: f32[1,32], index: 2, kind: input, shape index: {}]
  %s3 = inlined_call_operand.vmem [shape: bf16[32,32], index: 3, kind: output, shape index: {}]
  %s4 = sld [smem:[#allocation0]]
  $region83: #{mnist_convnet_forward.4} parent=0
    _
  %s6 = ssub.s32 1, %s4
  %s7 = scalar_select 0, %s6, %s4
  $region1: #{mnist_convnet_forward.4} parent=0
    #allocation2 [shape = 'u8[65536]{0}', space=vmem, size = 0x10000, scoped, tag = 'input window, operand 0']
    loop: start=0, step=1, limit=4
    $region2: #{mnist_convnet_forward.4} parent=1 // loop_pre_header
      _
    $region3: #{mnist_convnet_forward.4} parent=1 // loop_header
      %s9 = sphi 0, %s13
      %p10 = scmp.ge.s32.totalorder %s9, 4
      %s19 = sphi 0, %s21
      %s22 = sphi 0, %s19
      %s23 = sphi 0, %s22
      %s39 = sphi 0, %s23
      %s43 = sphi 0, %s43
      %s45 = sphi 0, %s43
      %s46 = sphi 0, %s45
      %s60 = sphi 0, %s46
      %s64 = sphi 0, %s64
      %s66 = sphi 0, %s64
      %s67 = sphi 0, %s66
      %s81 = sphi 0, %s67
      %s87 = sphi 0, %s89
      %s90 = sphi 0, %s87
      %s91 = sphi 0, %s90
      %s107 = sphi 0, %s91
    $region4: #{mnist_convnet_forward.4} parent=1 // loop_header_branch
      %12 = sbr.rel (%p10) target = $region8
    $region5: #{mnist_convnet_forward.4} parent=1 // loop_body
      %s14 = ssub.s32 %s9, 1
      %s15 = ssub.s32 %s9, 2
      %s16 = sadd.s32 %s9, 1
      %s17 = ssub.s32 %s9, %s16
      %p18 = scmp.eq.s32.totalorder %s17, 0
      %s20 = sadd.s32 %s19, 1
      %s21 = scalar_select %p18, %s19, %s20
      %p24 = pneg %p18
      %p25 = scmp.eq.s32.totalorder %s9, 1
      %p26 = por %p24, %p25
      %p27 = scmp.ne.s32.totalorder %s19, %s22
      %p28 = scmp.eq.s32.totalorder %s9, 0
      %p29 = por %p27, %p28
      %p30 = scmp.ne.s32.totalorder %s19, %s22
      %p31 = scmp.eq.s32.totalorder %s14, 1
      %p32 = por %p30, %p31
      %p33 = scmp.ne.s32.totalorder %s22, %s23
      %p34 = scmp.eq.s32.totalorder %s14, 0
      %p35 = por %p33, %p34
      %p36 = scmp.ne.s32.totalorder %s22, %s23
      %p37 = scmp.eq.s32.totalorder %s15, 1
      %p38 = por %p36, %p37
      %p40 = scmp.ne.s32.totalorder %s23, %s39
      %p41 = scmp.eq.s32.totalorder %s15, 0
      %p42 = por %p40, %p41
      %s44 = sadd.s32 %s43, 1
      %p47 = scmp.eq.s32.totalorder %s9, 1
      %p48 = scmp.ne.s32.totalorder %s43, %s45
      %p49 = scmp.eq.s32.totalorder %s9, 0
      %p50 = por %p48, %p49
      %p51 = scmp.ne.s32.totalorder %s43, %s45
      %p52 = scmp.eq.s32.totalorder %s14, 1
      %p53 = por %p51, %p52
      %p54 = scmp.ne.s32.totalorder %s45, %s46
      %p55 = scmp.eq.s32.totalorder %s14, 0
      %p56 = por %p54, %p55
      %p57 = scmp.ne.s32.totalorder %s45, %s46
      %p58 = scmp.eq.s32.totalorder %s15, 1
      %p59 = por %p57, %p58
      %p61 = scmp.ne.s32.totalorder %s46, %s60
      %p62 = scmp.eq.s32.totalorder %s15, 0
      %p63 = por %p61, %p62
      %s65 = sadd.s32 %s64, 1
      %p68 = scmp.eq.s32.totalorder %s9, 1
      %p69 = scmp.ne.s32.totalorder %s64, %s66
      %p70 = scmp.eq.s32.totalorder %s9, 0
      %p71 = por %p69, %p70
      %p72 = scmp.ne.s32.totalorder %s64, %s66
      %p73 = scmp.eq.s32.totalorder %s14, 1
      %p74 = por %p72, %p73
      %p75 = scmp.ne.s32.totalorder %s66, %s67
      %p76 = scmp.eq.s32.totalorder %s14, 0
      %p77 = por %p75, %p76
      %p78 = scmp.ne.s32.totalorder %s66, %s67
      %p79 = scmp.eq.s32.totalorder %s15, 1
      %p80 = por %p78, %p79
      %p82 = scmp.ne.s32.totalorder %s67, %s81
      %p83 = scmp.eq.s32.totalorder %s15, 0
      %p84 = por %p82, %p83
      %s85 = ssub.s32 %s9, %s16
      %p86 = scmp.eq.s32.totalorder %s85, 0
      %s88 = sadd.s32 %s87, 1
      %s89 = scalar_select %p86, %s87, %s88
      %p92 = pneg %p86
      %p93 = scmp.eq.s32.totalorder %s9, 1
      %p94 = por %p92, %p93
      %p95 = scmp.ne.s32.totalorder %s87, %s90
      %p96 = scmp.eq.s32.totalorder %s9, 0
      %p97 = por %p95, %p96
      %p98 = scmp.ne.s32.totalorder %s87, %s90
      %p99 = scmp.eq.s32.totalorder %s14, 1
      %p100 = por %p98, %p99
      %p101 = scmp.ne.s32.totalorder %s90, %s91
      %p102 = scmp.eq.s32.totalorder %s14, 0
      %p103 = por %p101, %p102
      %p104 = scmp.ne.s32.totalorder %s90, %s91
      %p105 = scmp.eq.s32.totalorder %s15, 1
      %p106 = por %p104, %p105
      %p108 = scmp.ne.s32.totalorder %s91, %s107
      %p109 = scmp.eq.s32.totalorder %s15, 0
      %p110 = por %p108, %p109
      %p111 = scmp.le.s32.totalorder 1, %s9
      %p112 = scmp.lt.s32.totalorder %s9, 3
      %p113 = pnand %p111, %p112
      %p114 = pneg %p113
      // Predicated region
      $region9: #{mnist_convnet_forward.4} parent=5 // pred_check
        _
      $region10: #{mnist_convnet_forward.4} parent=5 // pred_check_branch
        %116 = sbr.rel (%p113) target = $region12
      $region11: #{mnist_convnet_forward.4} parent=5 // pred_region
        %s117 = ssub.s32 %s9, 1
        // Predicated region
        $region13: #{mnist_convnet_forward.4} parent=11 // pred_check
          %p118 = pneg %p56
        $region14: #{mnist_convnet_forward.4} parent=11 // pred_check_branch
          %120 = sbr.rel (%p118) target = $region16
        $region15: #{mnist_convnet_forward.4} parent=11 // pred_region
          _
        $region16: #{mnist_convnet_forward.4} parent=11 // pred_fallthru
          _
        // Predicated region
        $region17: #{mnist_convnet_forward.4} parent=11 // pred_check
          %p121 = pneg %p77
        $region18: #{mnist_convnet_forward.4} parent=11 // pred_check_branch
          %123 = sbr.rel (%p121) target = $region20
        $region19: #{mnist_convnet_forward.4} parent=11 // pred_region
          _
        $region20: #{mnist_convnet_forward.4} parent=11 // pred_fallthru
          _
      $region12: #{mnist_convnet_forward.4} parent=5 // pred_fallthru
        _
      %p124 = scmp.lt.s32.totalorder %s9, 2
      // Predicated region
      $region21: #{mnist_convnet_forward.4} parent=5 // pred_check
        %p125 = pneg %p124
      $region22: #{mnist_convnet_forward.4} parent=5 // pred_check_branch
        %127 = sbr.rel (%p125) target = $region24
      $region23: #{mnist_convnet_forward.4} parent=5 // pred_region
        // Predicated region
        $region25: #{mnist_convnet_forward.4} parent=23 // pred_check
          %p128 = pneg %p29
        $region26: #{mnist_convnet_forward.4} parent=23 // pred_check_branch
          %130 = sbr.rel (%p128) target = $region28
        $region27: #{mnist_convnet_forward.4} parent=23 // pred_region
          %s131 = sand.u32 %s19, 1
          %s132 = sand.u32 %s19, 1
          %s133 = smul.addr %s132, 64
          %s134 = scalar_lea.vmem [#allocation2], %s133
          %s135 = smul.u32 2, %s9
          %s136 = smul.addr %s135, 2
          %s137 = smul.addr %s136, 4
          %s138 = scalar_lea.vmem %s0, %s137
          // Predicated region
          $region29: #{mnist_convnet_forward.4} parent=27 // pred_check
            _
          $region30: #{mnist_convnet_forward.4} parent=27 // pred_check_branch
            %140 = sbr.rel (0) target = $region32
          $region31: #{mnist_convnet_forward.4} parent=27 // pred_region
            // Predicated region
            $region33: #{mnist_convnet_forward.4} parent=31 // pred_check
              _
            $region34: #{mnist_convnet_forward.4} parent=31 // pred_check_branch
              %142 = sbr.rel (0) target = $region36
            $region35: #{mnist_convnet_forward.4} parent=31 // pred_region
              // Predicated region
              $region48: #{mnist_convnet_forward.4} parent=35 // pred_check
                _
              $region49: #{mnist_convnet_forward.4} parent=35 // pred_check_branch
                %172 = sbr.rel (0) target = $region51
              $region50: #{mnist_convnet_forward.4} parent=35 // pred_region
                loop: start=0, step=1, limit=1
                $region52: #{mnist_convnet_forward.4} parent=50 // loop_pre_header
                  _
                $region53: #{mnist_convnet_forward.4} parent=50 // loop_header
                  %s174 = sphi 0, %s178
                  %p175 = scmp.ge.s32.totalorder %s174, 1
                  %s179 = sphi %s138, %s138
                  %s180 = sphi %s134, %s134
                $region54: #{mnist_convnet_forward.4} parent=50 // loop_header_branch
                  %177 = sbr.rel (%p175) target = $region58
                $region55: #{mnist_convnet_forward.4} parent=50 // loop_body
                  %v181 = vld [vmem:[%s179] sm:$0xff]
                  %182 = vst [vmem:[%s180] sm:$0xff] %v181
                  %v183 = vld [vmem:[%s179 + $0x8] sm:$0xff]
                  %184 = vst [vmem:[%s180 + $0x8] sm:$0xff] %v183
                  %v185 = vld [vmem:[%s179 + $0x20] sm:$0xff]
                  %186 = vst [vmem:[%s180 + $0x10] sm:$0xff] %v185
                  %v187 = vld [vmem:[%s179 + $0x28] sm:$0xff]
                  %188 = vst [vmem:[%s180 + $0x18] sm:$0xff] %v187
                  %v189 = vld [vmem:[%s179 + $0x40] sm:$0xff]
                  %190 = vst [vmem:[%s180 + $0x20] sm:$0xff] %v189
                  %v191 = vld [vmem:[%s179 + $0x48] sm:$0xff]
                  %192 = vst [vmem:[%s180 + $0x28] sm:$0xff] %v191
                  %v193 = vld [vmem:[%s179 + $0x60] sm:$0xff]
                  %194 = vst [vmem:[%s180 + $0x30] sm:$0xff] %v193
                  %v195 = vld [vmem:[%s179 + $0x68] sm:$0xff]
                  %196 = vst [vmem:[%s180 + $0x38] sm:$0xff] %v195
                $region56: #{mnist_convnet_forward.4} parent=50 // loop_footer
                  %s178 = sadd.s32 1, %s174
                $region57: #{mnist_convnet_forward.4} parent=50 // loop_footer_branch
                  %173 = sbr.rel target = $region53
                $region58: #{mnist_convnet_forward.4} parent=50 // loop_exit
                  _
              $region51: #{mnist_convnet_forward.4} parent=35 // pred_fallthru
                _
              // Predicated region
              $region59: #{mnist_convnet_forward.4} parent=35 // pred_check
                _
              $region60: #{mnist_convnet_forward.4} parent=35 // pred_check_branch
                %198 = sbr.rel target = $region62
              $region61: #{mnist_convnet_forward.4} parent=35 // pred_region
                _
              $region62: #{mnist_convnet_forward.4} parent=35 // pred_fallthru
                _
            $region36: #{mnist_convnet_forward.4} parent=31 // pred_fallthru
              _
            // Predicated region
            $region37: #{mnist_convnet_forward.4} parent=31 // pred_check
              _
            $region38: #{mnist_convnet_forward.4} parent=31 // pred_check_branch
              %144 = sbr.rel target = $region40
            $region39: #{mnist_convnet_forward.4} parent=31 // pred_region
              %s146 = ssub.s32 256, 1
              loop: start=0, step=1, limit=1
              $region41: #{mnist_convnet_forward.4} parent=39 // loop_pre_header
                _
              $region42: #{mnist_convnet_forward.4} parent=39 // loop_header
                %s148 = sphi 0, %s152
                %p149 = scmp.ge.s32.totalorder %s148, 1
                %s153 = sphi %s138, %s138
                %s154 = sphi %s134, %s134
              $region43: #{mnist_convnet_forward.4} parent=39 // loop_header_branch
                %151 = sbr.rel (%p149) target = $region47
              $region44: #{mnist_convnet_forward.4} parent=39 // loop_body
                %v155 = vld [vmem:[%s153] sm:%s146]
                %156 = vst [vmem:[%s154] sm:%s146] %v155
                %v157 = vld [vmem:[%s153 + $0x8] sm:%s146]
                %158 = vst [vmem:[%s154 + $0x8] sm:%s146] %v157
                %v159 = vld [vmem:[%s153 + $0x20] sm:%s146]
                %160 = vst [vmem:[%s154 + $0x10] sm:%s146] %v159
                %v161 = vld [vmem:[%s153 + $0x28] sm:%s146]
                %162 = vst [vmem:[%s154 + $0x18] sm:%s146] %v161
                %v163 = vld [vmem:[%s153 + $0x40] sm:%s146]
                %164 = vst [vmem:[%s154 + $0x20] sm:%s146] %v163
                %v165 = vld [vmem:[%s153 + $0x48] sm:%s146]
                %166 = vst [vmem:[%s154 + $0x28] sm:%s146] %v165
                %v167 = vld [vmem:[%s153 + $0x60] sm:%s146]
                %168 = vst [vmem:[%s154 + $0x30] sm:%s146] %v167
                %v169 = vld [vmem:[%s153 + $0x68] sm:%s146]
                %170 = vst [vmem:[%s154 + $0x38] sm:%s146] %v169
              $region45: #{mnist_convnet_forward.4} parent=39 // loop_footer
                %s152 = sadd.s32 1, %s148
              $region46: #{mnist_convnet_forward.4} parent=39 // loop_footer_branch
                %147 = sbr.rel target = $region42
              $region47: #{mnist_convnet_forward.4} parent=39 // loop_exit
                _
            $region40: #{mnist_convnet_forward.4} parent=31 // pred_fallthru
              _
          $region32: #{mnist_convnet_forward.4} parent=27 // pred_fallthru
            _
          %199 = vnop
        $region28: #{mnist_convnet_forward.4} parent=23 // pred_fallthru
          _
      $region24: #{mnist_convnet_forward.4} parent=5 // pred_fallthru
        _
      %p200 = scmp.le.s32.totalorder 1, %s9
      %p201 = scmp.lt.s32.totalorder %s9, 3
      %p202 = pnand %p200, %p201
      %p203 = pneg %p202
      // Predicated region
      $region63: #{mnist_convnet_forward.4} parent=5 // pred_check
        _
      $region64: #{mnist_convnet_forward.4} parent=5 // pred_check_branch
        %205 = sbr.rel (%p202) target = $region66
      $region65: #{mnist_convnet_forward.4} parent=5 // pred_region
        %s206 = ssub.s32 %s9, 1
        %s207 = sand.u32 %s22, 1
        %s208 = sand.u32 %s22, 1
        %s209 = smul.addr %s208, 64
        %s210 = scalar_lea.vmem [#allocation2], %s209
        // Predicated region
        $region67: #{mnist_convnet_forward.4} parent=65 // pred_check
          %p211 = pneg %p35
        $region68: #{mnist_convnet_forward.4} parent=65 // pred_check_branch
          %213 = sbr.rel (%p211) target = $region70
        $region69: #{mnist_convnet_forward.4} parent=65 // pred_region
          _
        $region70: #{mnist_convnet_forward.4} parent=65 // pred_fallthru
          _
        %s214 = sand.u32 %s22, 1
        %s215 = sand.u32 %s22, 1
        %s216 = smul.addr %s215, 64
        %s217 = scalar_lea.vmem [#allocation2], %s216
        %p218 = pneg %p35
        %p219 = pneg %p32
        %p220 = pneg %p56
        %p221 = pneg %p53
        %p222 = pneg %p77
        %p223 = pneg %p74
        %p224 = pneg %p103
        %p225 = pneg %p100
        %s226 = smul.u32 2, %s14
        %p227 = scmp.lt.s32.totalorder %s226, 3
        %s228 = scalar_select %p227, %s226, 3
        %s229 = smul.addr %s228, 4
        %s230 = scalar_lea.vmem %s3, %s229
        %s231 = smul.u32 2, %s14
        %s232 = smul.u32 2, %s14
        %p233 = scmp.lt.s32.totalorder %s232, 3
        %s234 = scalar_select %p233, %s232, 3
        %s235 = smul.addr %s234, 4
        %s236 = scalar_lea.vmem %s3, %s235
        %s237 = smul.u32 2, %s14
        %v239 = vld [vmem:[%s210] sm:$0xff]
        %v240 = vld [vmem:[%s210 + $0x8] sm:$0xff]
        %v241 = vld [vmem:[%s210 + $0x10] sm:$0xff]
        %v242 = vld [vmem:[%s210 + $0x18] sm:$0xff]
        %v243 = vld [vmem:[%s210 + $0x20] sm:$0xff]
        %v244 = vld [vmem:[%s210 + $0x28] sm:$0xff]
        %v245 = vld [vmem:[%s210 + $0x30] sm:$0xff]
        %v246 = vld [vmem:[%s210 + $0x38] sm:$0xff]
        %v247 = vld [vmem:[%s1] sm:$0xf]
        %v248 = vld [vmem:[%s1 + $0x4] sm:$0xf]
        %v249 = vld [vmem:[%s1 + $0x8] sm:$0xf]
        %v250 = vld [vmem:[%s1 + $0xc] sm:$0xf]
        %v251 = vld [vmem:[%s1 + $0x10] sm:$0xf]
        %v252 = vld [vmem:[%s1 + $0x14] sm:$0xf]
        %v253 = vld [vmem:[%s1 + $0x18] sm:$0xf]
        %v254 = vld [vmem:[%s1 + $0x1c] sm:$0xf]
        %v255 = vld [vmem:[%s1 + $0x20] sm:$0xf]
        %v256 = vld [vmem:[%s1 + $0x24] sm:$0xf]
        %v257 = vld [vmem:[%s1 + $0x28] sm:$0xf]
        %v258 = vld [vmem:[%s1 + $0x2c] sm:$0xf]
        %v259 = vld [vmem:[%s1 + $0x30] sm:$0xf]
        %v260 = vld [vmem:[%s1 + $0x34] sm:$0xf]
        %v261 = vld [vmem:[%s1 + $0x38] sm:$0xf]
        %v262 = vld [vmem:[%s1 + $0x3c] sm:$0xf]
        %v263 = vld [vmem:[%s1 + $0x40] sm:$0xf]
        %v264 = vld [vmem:[%s1 + $0x44] sm:$0xf]
        %v265 = vld [vmem:[%s1 + $0x48] sm:$0xf]
        %v266 = vld [vmem:[%s1 + $0x4c] sm:$0xf]
        %v267 = vld [vmem:[%s1 + $0x50] sm:$0xf]
        %v268 = vld [vmem:[%s1 + $0x54] sm:$0xf]
        %v269 = vld [vmem:[%s1 + $0x58] sm:$0xf]
        %v270 = vld [vmem:[%s1 + $0x5c] sm:$0xf]
        %v271 = vld [vmem:[%s1 + $0x60] sm:$0xf]
        %v272 = vld [vmem:[%s1 + $0x64] sm:$0xf]
        %v273 = vld [vmem:[%s1 + $0x68] sm:$0xf]
        %v274 = vld [vmem:[%s1 + $0x6c] sm:$0xf]
        %v275 = vld [vmem:[%s1 + $0x70] sm:$0xf]
        %v276 = vld [vmem:[%s1 + $0x74] sm:$0xf]
        %v277 = vld [vmem:[%s1 + $0x78] sm:$0xf]
        %v278 = vld [vmem:[%s1 + $0x7c] sm:$0xf]
        %v287 = vunpack.c.l.b16 %v239
        %v288 = vunpack.c.h.b16 %v239
        %v289 = vunpack.c.l.b16 %v240
        %v290 = vunpack.c.h.b16 %v240
        %v291 = vunpack.c.l.b16 %v241
        %v292 = vunpack.c.h.b16 %v241
        %v293 = vunpack.c.l.b16 %v242
        %v294 = vunpack.c.h.b16 %v242
        %v295 = vunpack.c.l.b16 %v243
        %v296 = vunpack.c.h.b16 %v243
        %v297 = vunpack.c.l.b16 %v244
        %v298 = vunpack.c.h.b16 %v244
        %v299 = vunpack.c.l.b16 %v245
        %v300 = vunpack.c.h.b16 %v245
        %v301 = vunpack.c.l.b16 %v246
        %v302 = vunpack.c.h.b16 %v246
        %v303 = vpack.c.b16 %v289, %v287
        %v304 = vpack.c.b16 %v290, %v288
        %v305 = vpack.c.b16 %v293, %v291
        %v306 = vpack.c.b16 %v294, %v292
        %v307 = vpack.c.b16 %v297, %v295
        %v308 = vpack.c.b16 %v298, %v296
        %v309 = vpack.c.b16 %v301, %v299
        %v310 = vpack.c.b16 %v302, %v300
        %v351 = vunpack.c.l.b16 %v247
        %v352 = vunpack.c.l.b16 %v248
        %v353 = vunpack.c.l.b16 %v249
        %v354 = vunpack.c.l.b16 %v250
        %v355 = vunpack.c.l.b16 %v251
        %v356 = vunpack.c.l.b16 %v252
        %v357 = vunpack.c.l.b16 %v253
        %v358 = vunpack.c.l.b16 %v254
        %v359 = vunpack.c.l.b16 %v255
        %v360 = vunpack.c.l.b16 %v256
        %v361 = vunpack.c.l.b16 %v257
        %v362 = vunpack.c.l.b16 %v258
        %v363 = vunpack.c.l.b16 %v259
        %v364 = vunpack.c.l.b16 %v260
        %v365 = vunpack.c.l.b16 %v261
        %v366 = vunpack.c.l.b16 %v262
        %v367 = vunpack.c.l.b16 %v263
        %v368 = vunpack.c.l.b16 %v264
        %v369 = vunpack.c.l.b16 %v265
        %v370 = vunpack.c.l.b16 %v266
        %v371 = vunpack.c.l.b16 %v267
        %v372 = vunpack.c.l.b16 %v268
        %v373 = vunpack.c.l.b16 %v269
        %v374 = vunpack.c.l.b16 %v270
        %v375 = vunpack.c.l.b16 %v271
        %v376 = vunpack.c.l.b16 %v272
        %v377 = vunpack.c.l.b16 %v273
        %v378 = vunpack.c.l.b16 %v274
        %v379 = vunpack.c.l.b16 %v275
        %v380 = vunpack.c.l.b16 %v276
        %v381 = vunpack.c.l.b16 %v277
        %v382 = vunpack.c.l.b16 %v278
        %v383 = vpack.c.b16 %v352, %v351
        %v384 = vpack.c.b16 %v354, %v353
        %v385 = vpack.c.b16 %v356, %v355
        %v386 = vpack.c.b16 %v358, %v357
        %v387 = vpack.c.b16 %v360, %v359
        %v388 = vpack.c.b16 %v362, %v361
        %v389 = vpack.c.b16 %v364, %v363
        %v390 = vpack.c.b16 %v366, %v365
        %v391 = vpack.c.b16 %v368, %v367
        %v392 = vpack.c.b16 %v370, %v369
        %v393 = vpack.c.b16 %v372, %v371
        %v394 = vpack.c.b16 %v374, %v373
        %v395 = vpack.c.b16 %v376, %v375
        %v396 = vpack.c.b16 %v378, %v377
        %v397 = vpack.c.b16 %v380, %v379
        %v398 = vpack.c.b16 %v382, %v381
        %415 = vmatprep.subr.bf16.mxu0 0
        %416 = vmatpush1.bf16.msra.mxu0 %v390
        %417 = vmatprep.subr.bf16.mxu0 0
        %418 = vmatpush1.bf16.msra.mxu0 %v389
        %419 = vmatprep.subr.bf16.mxu0 0
        %420 = vmatpush1.bf16.msra.mxu0 %v388
        %421 = vmatprep.subr.bf16.mxu0 0
        %422 = vmatpush1.bf16.msra.mxu0 %v387
        %423 = vmatprep.subr.bf16.mxu0 0
        %424 = vmatpush1.bf16.msra.mxu0 %v386
        %425 = vmatprep.subr.bf16.mxu0 0
        %426 = vmatpush1.bf16.msra.mxu0 %v385
        %427 = vmatprep.subr.bf16.mxu0 0
        %428 = vmatpush1.bf16.msra.mxu0 %v384
        %429 = vmatprep.subr.bf16.mxu0 0
        %430 = vmatpush1.bf16.msra.mxu0 %v383
        %431 = vmatprep.subr.bf16.mxu0 0
        %432 = vmatpush2.bf16.msra.mxu0 %v398
        %433 = vmatprep.subr.bf16.mxu0 0
        %434 = vmatpush2.bf16.msra.mxu0 %v397
        %435 = vmatprep.subr.bf16.mxu0 0
        %436 = vmatpush2.bf16.msra.mxu0 %v396
        %437 = vmatprep.subr.bf16.mxu0 0
        %438 = vmatpush2.bf16.msra.mxu0 %v395
        %439 = vmatprep.subr.bf16.mxu0 0
        %440 = vmatpush2.bf16.msra.mxu0 %v394
        %441 = vmatprep.subr.bf16.mxu0 0
        %442 = vmatpush2.bf16.msra.mxu0 %v393
        %443 = vmatprep.subr.bf16.mxu0 0
        %444 = vmatpush2.bf16.msra.mxu0 %v392
        %445 = vmatprep.subr.bf16.mxu0 0
        %446 = vmatpush2.bf16.msra.mxu0 %v391
        %447 = vmatprep.mubr.bf16.mxu0 %v304
        %448 = vmatmul.mubr.bf16.gmra.mxu0 %v303
        %v449 = vpop.f32.mrf.mxu0
        %v450 = vadd.f32 0.0, %v449
        %v451 = vpop.f32.mrf.mxu0
        %v452 = vpop.f32.mrf.mxu0
        %v453 = vadd.f32 0.0, %v452
        %v454 = vpop.f32.mrf.mxu0
        %455 = vmatprep.mubr.bf16.mxu0 %v306
        %456 = vmatmul.mubr.bf16.gmra.mxu0 %v305
        %v457 = vpop.f32.mrf.mxu0
        %v458 = vadd.f32 0.0, %v457
        %v459 = vpop.f32.mrf.mxu0
        %v460 = vpop.f32.mrf.mxu0
        %v461 = vadd.f32 0.0, %v460
        %v462 = vpop.f32.mrf.mxu0
        %463 = vmatprep.mubr.bf16.mxu0 %v308
        %464 = vmatmul.mubr.bf16.gmra.mxu0 %v307
        %v465 = vpop.f32.mrf.mxu0
        %v466 = vadd.f32 0.0, %v465
        %v467 = vpop.f32.mrf.mxu0
        %v468 = vpop.f32.mrf.mxu0
        %v469 = vadd.f32 0.0, %v468
        %v470 = vpop.f32.mrf.mxu0
        %471 = vmatprep.mubr.bf16.mxu0 %v310
        %472 = vmatmul.mubr.bf16.gmra.mxu0 %v309
        %v473 = vpop.f32.mrf.mxu0
        %v474 = vadd.f32 0.0, %v473
        %v475 = vpop.f32.mrf.mxu0
        %v476 = vpop.f32.mrf.mxu0
        %v477 = vadd.f32 0.0, %v476
        %v478 = vpop.f32.mrf.mxu0
        %479 = vdwg.mxu0
        %v480 = vmax.f32 %v450, %v458
        %v481 = vmax.f32 %v453, %v461
        %v482 = vmax.f32 %v466, %v474
        %v483 = vmax.f32 %v469, %v477
        %v484 = vmax.f32 %v480, %v482
        %v485 = vmax.f32 %v481, %v483
        %v486 = vld [vmem:[%s2] sm:$0x1]
        %v488 = vlaneseq
        %v489 = vshrl.u32 %v488, 7
        %v490 = vsub.s32 0, %v489
        %v491 = vrot.slane %v486, %v490
        %v493 = vadd.f32 %v484, %v491
        %v494 = vadd.f32 %v485, %v491
        %v495 = vmax.f32 %v493, 0.0
        %v496 = vmax.f32 %v494, 0.0
        %v497 = vpack.c.bf16 %v496, %v495
        %v499 = vunpack.c.l.b16 %v497
        %v500 = vunpack.c.h.b16 %v497
        %v501 = vpack.c.b16 %v499, %v499
        %v502 = vpack.c.b16 %v500, %v500
        %vm505 = vcmask 257024
        %506 = vst.msk [vmem:[%s236] sm:$0xf] %vm505, %v501
        %507 = vst.msk [vmem:[%s236 + $0x4] sm:$0xf] %vm505, %v502
        %s508 = smul.u32 2, %s14
        %p509 = scmp.lt.s32.totalorder %s508, 3
        %s510 = scalar_select %p509, %s508, 3
        %s511 = smul.addr %s510, 4
        %s512 = scalar_lea.vmem %s3, %s511
        // Predicated region
        $region71: #{mnist_convnet_forward.4} parent=65 // pred_check
          %p513 = pneg %p100
        $region72: #{mnist_convnet_forward.4} parent=65 // pred_check_branch
          %515 = sbr.rel (%p513) target = $region74
        $region73: #{mnist_convnet_forward.4} parent=65 // pred_region
          %s516 = smul.u32 2, %s14
        $region74: #{mnist_convnet_forward.4} parent=65 // pred_fallthru
          _
      $region66: #{mnist_convnet_forward.4} parent=5 // pred_fallthru
        _
      %p517 = scmp.le.s32.totalorder 2, %s9
      // Predicated region
      $region75: #{mnist_convnet_forward.4} parent=5 // pred_check
        %p518 = pneg %p517
      $region76: #{mnist_convnet_forward.4} parent=5 // pred_check_branch
        %520 = sbr.rel (%p518) target = $region78
      $region77: #{mnist_convnet_forward.4} parent=5 // pred_region
        %s521 = ssub.s32 %s9, 2
        // Predicated region
        $region79: #{mnist_convnet_forward.4} parent=77 // pred_check
          %p522 = pneg %p106
        $region80: #{mnist_convnet_forward.4} parent=77 // pred_check_branch
          %524 = sbr.rel (%p522) target = $region82
        $region81: #{mnist_convnet_forward.4} parent=77 // pred_region
          %s525 = smul.u32 2, %s15
          %p526 = scmp.lt.s32.totalorder %s525, 3
          %s527 = scalar_select %p526, %s525, 3
          %s528 = smul.addr %s527, 4
          %s529 = scalar_lea.vmem %s3, %s528
        $region82: #{mnist_convnet_forward.4} parent=77 // pred_fallthru
          _
      $region78: #{mnist_convnet_forward.4} parent=5 // pred_fallthru
        _
    $region6: #{mnist_convnet_forward.4} parent=1 // loop_footer
      %s13 = sadd.s32 1, %s9
    $region7: #{mnist_convnet_forward.4} parent=1 // loop_footer_branch
      %8 = sbr.rel target = $region3
    $region8: #{mnist_convnet_forward.4} parent=1 // loop_exit
      _

// kernel: mnist_convnet_forward.5
$region0: #{mnist_convnet_forward.5}
  #allocation0 [shape = 'u32[]', space=smem, size = 0x4, offset = 0x4, fixed_abs, tag = 'smem constant byte address 0x4 - core index']
  #allocation1 [shape = 'u32[144,128]{1,0:T(1,128)}', space=vmem, size = 0x12000, scoped, tag = 'internal scratch']
  %s0 = inlined_call_operand.vmem [shape: bf16[2,512], index: 0, kind: input, shape index: {}]
  %s1 = inlined_call_operand.vmem [shape: bf16[512,64], index: 1, kind: input, shape index: {}]
  %s2 = inlined_call_operand.vmem [shape: f32[1,64], index: 2, kind: input, shape index: {}]
  %s3 = inlined_call_operand.vmem [shape: bf16[64,16], index: 3, kind: input, shape index: {}]
  %s4 = inlined_call_operand.vmem [shape: f32[1,16], index: 4, kind: input, shape index: {}]
  %s5 = inlined_call_operand.hbm [shape: f32[2,16], index: 5, kind: output, shape index: {}]
  %s6 = sld [smem:[#allocation0]]
  $region30: #{mnist_convnet_forward.5} parent=0
    _
  %s8 = ssub.s32 1, %s6
  %s9 = scalar_select 0, %s8, %s6
  $region1: #{mnist_convnet_forward.5} parent=0
    #allocation2 [shape = 'u8[1024]{0}', space=vmem, size = 0x400, scoped, tag = 'output window, operand 0, single buffered']
    #allocation3 [shape = 's32[1]{0}', space=sflag, size = 0x4, scoped, tag = 'scoped memory for mnist_convnet_forward.5']
    %10 = vsyncpa [#allocation3], 0
    // Predicated region
    $region2: #{mnist_convnet_forward.5} parent=1 // pred_check
      _
    $region3: #{mnist_convnet_forward.5} parent=1 // pred_check_branch
      %12 = sbr.rel (0) target = $region5
    $region4: #{mnist_convnet_forward.5} parent=1 // pred_region
      _
    $region5: #{mnist_convnet_forward.5} parent=1 // pred_fallthru
      _
    // Predicated region
    $region6: #{mnist_convnet_forward.5} parent=1 // pred_check
      _
    $region7: #{mnist_convnet_forward.5} parent=1 // pred_check_branch
      %14 = sbr.rel (0) target = $region9
    $region8: #{mnist_convnet_forward.5} parent=1 // pred_region
      _
    $region9: #{mnist_convnet_forward.5} parent=1 // pred_fallthru
      _
    // Predicated region
    $region10: #{mnist_convnet_forward.5} parent=1 // pred_check
      _
    $region11: #{mnist_convnet_forward.5} parent=1 // pred_check_branch
      %16 = sbr.rel (0) target = $region13
    $region12: #{mnist_convnet_forward.5} parent=1 // pred_region
      _
    $region13: #{mnist_convnet_forward.5} parent=1 // pred_fallthru
      _
    // Predicated region
    $region14: #{mnist_convnet_forward.5} parent=1 // pred_check
      _
    $region15: #{mnist_convnet_forward.5} parent=1 // pred_check_branch
      %18 = sbr.rel (0) target = $region17
    $region16: #{mnist_convnet_forward.5} parent=1 // pred_region
      _
    $region17: #{mnist_convnet_forward.5} parent=1 // pred_fallthru
      _
    // Predicated region
    $region18: #{mnist_convnet_forward.5} parent=1 // pred_check
      _
    $region19: #{mnist_convnet_forward.5} parent=1 // pred_check_branch
      %20 = sbr.rel (0) target = $region21
    $region20: #{mnist_convnet_forward.5} parent=1 // pred_region
      _
    $region21: #{mnist_convnet_forward.5} parent=1 // pred_fallthru
      _
    %v22 = vld [vmem:[%s0] sm:$0xf]
    %v23 = vld [vmem:[%s1] sm:$0xf]
    %v24 = vld [vmem:[%s1 + $0x4] sm:$0xf]
    %v25 = vld [vmem:[%s1 + $0x8] sm:$0xf]
    %v26 = vld [vmem:[%s1 + $0xc] sm:$0xf]
    %v27 = vld [vmem:[%s1 + $0x10] sm:$0xf]
    %v28 = vld [vmem:[%s1 + $0x14] sm:$0xf]
    %v29 = vld [vmem:[%s1 + $0x18] sm:$0xf]
    %v30 = vld [vmem:[%s1 + $0x1c] sm:$0xf]
    %v31 = vld [vmem:[%s1 + $0x20] sm:$0xf]
    %v32 = vld [vmem:[%s1 + $0x24] sm:$0xf]
    %v33 = vld [vmem:[%s1 + $0x28] sm:$0xf]
    %v34 = vld [vmem:[%s1 + $0x2c] sm:$0xf]
    %v35 = vld [vmem:[%s1 + $0x30] sm:$0xf]
    %v36 = vld [vmem:[%s1 + $0x34] sm:$0xf]
    %v37 = vld [vmem:[%s1 + $0x38] sm:$0xf]
    %v38 = vld [vmem:[%s1 + $0x3c] sm:$0xf]
    %v39 = vld [vmem:[%s1 + $0x40] sm:$0xf]
    %v40 = vld [vmem:[%s1 + $0x44] sm:$0xf]
    %v41 = vld [vmem:[%s1 + $0x48] sm:$0xf]
    %v42 = vld [vmem:[%s1 + $0x4c] sm:$0xf]
    %v43 = vld [vmem:[%s1 + $0x50] sm:$0xf]
    %v44 = vld [vmem:[%s1 + $0x54] sm:$0xf]
    %v45 = vld [vmem:[%s1 + $0x58] sm:$0xf]
    %v46 = vld [vmem:[%s1 + $0x5c] sm:$0xf]
    %v47 = vld [vmem:[%s1 + $0x60] sm:$0xf]
    %v48 = vld [vmem:[%s1 + $0x64] sm:$0xf]
    %v49 = vld [vmem:[%s1 + $0x68] sm:$0xf]
    %v50 = vld [vmem:[%s1 + $0x6c] sm:$0xf]
    %v51 = vld [vmem:[%s1 + $0x70] sm:$0xf]
    %v52 = vld [vmem:[%s1 + $0x74] sm:$0xf]
    %v53 = vld [vmem:[%s1 + $0x78] sm:$0xf]
    %v54 = vld [vmem:[%s1 + $0x7c] sm:$0xf]
    %v55 = vld [vmem:[%s1 + $0x80] sm:$0xf]
    %v56 = vld [vmem:[%s1 + $0x84] sm:$0xf]
    %v57 = vld [vmem:[%s1 + $0x88] sm:$0xf]
    %v58 = vld [vmem:[%s1 + $0x8c] sm:$0xf]
    %v59 = vld [vmem:[%s1 + $0x90] sm:$0xf]
    %v60 = vld [vmem:[%s1 + $0x94] sm:$0xf]
    %v61 = vld [vmem:[%s1 + $0x98] sm:$0xf]
    %v62 = vld [vmem:[%s1 + $0x9c] sm:$0xf]
    %v63 = vld [vmem:[%s1 + $0xa0] sm:$0xf]
    %v64 = vld [vmem:[%s1 + $0xa4] sm:$0xf]
    %v65 = vld [vmem:[%s1 + $0xa8] sm:$0xf]
    %v66 = vld [vmem:[%s1 + $0xac] sm:$0xf]
    %v67 = vld [vmem:[%s1 + $0xb0] sm:$0xf]
    %v68 = vld [vmem:[%s1 + $0xb4] sm:$0xf]
    %v69 = vld [vmem:[%s1 + $0xb8] sm:$0xf]
    %v70 = vld [vmem:[%s1 + $0xbc] sm:$0xf]
    %v71 = vld [vmem:[%s1 + $0xc0] sm:$0xf]
    %v72 = vld [vmem:[%s1 + $0xc4] sm:$0xf]
    %v73 = vld [vmem:[%s1 + $0xc8] sm:$0xf]
    %v74 = vld [vmem:[%s1 + $0xcc] sm:$0xf]
    %v75 = vld [vmem:[%s1 + $0xd0] sm:$0xf]
    %v76 = vld [vmem:[%s1 + $0xd4] sm:$0xf]
    %v77 = vld [vmem:[%s1 + $0xd8] sm:$0xf]
    %v78 = vld [vmem:[%s1 + $0xdc] sm:$0xf]
    %v79 = vld [vmem:[%s1 + $0xe0] sm:$0xf]
    %v80 = vld [vmem:[%s1 + $0xe4] sm:$0xf]
    %v81 = vld [vmem:[%s1 + $0xe8] sm:$0xf]
    %v82 = vld [vmem:[%s1 + $0xec] sm:$0xf]
    %v83 = vld [vmem:[%s1 + $0xf0] sm:$0xf]
    %v84 = vld [vmem:[%s1 + $0xf4] sm:$0xf]
    %v85 = vld [vmem:[%s1 + $0xf8] sm:$0xf]
    %v86 = vld [vmem:[%s1 + $0xfc] sm:$0xf]
    %v87 = vld [vmem:[%s2] sm:$0x1]
    %v89 = vlaneseq
    %v90 = vshrl.u32 %v89, 7
    %v91 = vsub.s32 0, %v90
    %v92 = vrot.slane %v87, %v91
    %v96 = vunpack.c.l.s4 1966171168
    %v97 = vunpack.c.0.s8 %v96
    %v98 = vlaneseq
    %v99 = vshrl.u32 %v98, 7
    %v100 = vsub.s32 %v97, %v99
    %v101 = vrot.slane %v22, %v100
    %v102 = vcombine.high %v101, %v101
    %v104 = vunpack.c.l.s4 1966171168
    %v105 = vunpack.c.0.s8 %v104
    %v106 = vlaneseq
    %v107 = vshrl.u32 %v106, 7
    %v108 = vsub.s32 %v105, %v107
    %v109 = vrot.slane %v101, %v108
    %v111 = vunpack.c.l.s4 1966171168
    %v112 = vunpack.c.0.s8 %v111
    %v113 = vlaneseq
    %v114 = vshrl.u32 %v113, 7
    %v115 = vsub.s32 %v112, %v114
    %v116 = vrot.slane %v102, %v115
    %v117 = vcombine.high %v109, %v109
    %v118 = vcombine.high %v116, %v116
    %v187 = vunpack.c.l.b16 %v23
    %v188 = vunpack.c.l.b16 %v24
    %v189 = vunpack.c.l.b16 %v25
    %v190 = vunpack.c.l.b16 %v26
    %v191 = vunpack.c.l.b16 %v27
    %v192 = vunpack.c.l.b16 %v28
    %v193 = vunpack.c.l.b16 %v29
    %v194 = vunpack.c.l.b16 %v30
    %v195 = vunpack.c.l.b16 %v31
    %v196 = vunpack.c.l.b16 %v32
    %v197 = vunpack.c.l.b16 %v33
    %v198 = vunpack.c.l.b16 %v34
    %v199 = vunpack.c.l.b16 %v35
    %v200 = vunpack.c.l.b16 %v36
    %v201 = vunpack.c.l.b16 %v37
    %v202 = vunpack.c.l.b16 %v38
    %v203 = vunpack.c.l.b16 %v39
    %v204 = vunpack.c.l.b16 %v40
    %v205 = vunpack.c.l.b16 %v41
    %v206 = vunpack.c.l.b16 %v42
    %v207 = vunpack.c.l.b16 %v43
    %v208 = vunpack.c.l.b16 %v44
    %v209 = vunpack.c.l.b16 %v45
    %v210 = vunpack.c.l.b16 %v46
    %v211 = vunpack.c.l.b16 %v47
    %v212 = vunpack.c.l.b16 %v48
    %v213 = vunpack.c.l.b16 %v49
    %v214 = vunpack.c.l.b16 %v50
    %v215 = vunpack.c.l.b16 %v51
    %v216 = vunpack.c.l.b16 %v52
    %v217 = vunpack.c.l.b16 %v53
    %v218 = vunpack.c.l.b16 %v54
    %v219 = vunpack.c.l.b16 %v55
    %v220 = vunpack.c.l.b16 %v56
    %v221 = vunpack.c.l.b16 %v57
    %v222 = vunpack.c.l.b16 %v58
    %v223 = vunpack.c.l.b16 %v59
    %v224 = vunpack.c.l.b16 %v60
    %v225 = vunpack.c.l.b16 %v61
    %v226 = vunpack.c.l.b16 %v62
    %v227 = vunpack.c.l.b16 %v63
    %v228 = vunpack.c.l.b16 %v64
    %v229 = vunpack.c.l.b16 %v65
    %v230 = vunpack.c.l.b16 %v66
    %v231 = vunpack.c.l.b16 %v67
    %v232 = vunpack.c.l.b16 %v68
    %v233 = vunpack.c.l.b16 %v69
    %v234 = vunpack.c.l.b16 %v70
    %v235 = vunpack.c.l.b16 %v71
    %v236 = vunpack.c.l.b16 %v72
    %v237 = vunpack.c.l.b16 %v73
    %v238 = vunpack.c.l.b16 %v74
    %v239 = vunpack.c.l.b16 %v75
    %v240 = vunpack.c.l.b16 %v76
    %v241 = vunpack.c.l.b16 %v77
    %v242 = vunpack.c.l.b16 %v78
    %v243 = vunpack.c.l.b16 %v79
    %v244 = vunpack.c.l.b16 %v80
    %v245 = vunpack.c.l.b16 %v81
    %v246 = vunpack.c.l.b16 %v82
    %v247 = vunpack.c.l.b16 %v83
    %v248 = vunpack.c.l.b16 %v84
    %v249 = vunpack.c.l.b16 %v85
    %v250 = vunpack.c.l.b16 %v86
    %v251 = vpack.c.b16 %v188, %v187
    %v252 = vpack.c.b16 %v190, %v189
    %v253 = vpack.c.b16 %v192, %v191
    %v254 = vpack.c.b16 %v194, %v193
    %v255 = vpack.c.b16 %v196, %v195
    %v256 = vpack.c.b16 %v198, %v197
    %v257 = vpack.c.b16 %v200, %v199
    %v258 = vpack.c.b16 %v202, %v201
    %v259 = vpack.c.b16 %v204, %v203
    %v260 = vpack.c.b16 %v206, %v205
    %v261 = vpack.c.b16 %v208, %v207
    %v262 = vpack.c.b16 %v210, %v209
    %v263 = vpack.c.b16 %v212, %v211
    %v264 = vpack.c.b16 %v214, %v213
    %v265 = vpack.c.b16 %v216, %v215
    %v266 = vpack.c.b16 %v218, %v217
    %v267 = vpack.c.b16 %v220, %v219
    %v268 = vpack.c.b16 %v222, %v221
    %v269 = vpack.c.b16 %v224, %v223
    %v270 = vpack.c.b16 %v226, %v225
    %v271 = vpack.c.b16 %v228, %v227
    %v272 = vpack.c.b16 %v230, %v229
    %v273 = vpack.c.b16 %v232, %v231
    %v274 = vpack.c.b16 %v234, %v233
    %v275 = vpack.c.b16 %v236, %v235
    %v276 = vpack.c.b16 %v238, %v237
    %v277 = vpack.c.b16 %v240, %v239
    %v278 = vpack.c.b16 %v242, %v241
    %v279 = vpack.c.b16 %v244, %v243
    %v280 = vpack.c.b16 %v246, %v245
    %v281 = vpack.c.b16 %v248, %v247
    %v282 = vpack.c.b16 %v250, %v249
    %315 = vmatprep.subr.bf16.mxu0 0
    %316 = vmatpush1.bf16.msra.mxu0 %v258
    %317 = vmatprep.subr.bf16.mxu0 0
    %318 = vmatpush1.bf16.msra.mxu0 %v257
    %319 = vmatprep.subr.bf16.mxu0 0
    %320 = vmatpush1.bf16.msra.mxu0 %v256
    %321 = vmatprep.subr.bf16.mxu0 0
    %322 = vmatpush1.bf16.msra.mxu0 %v255
    %323 = vmatprep.subr.bf16.mxu0 0
    %324 = vmatpush1.bf16.msra.mxu0 %v254
    %325 = vmatprep.subr.bf16.mxu0 0
    %326 = vmatpush1.bf16.msra.mxu0 %v253
    %327 = vmatprep.subr.bf16.mxu0 0
    %328 = vmatpush1.bf16.msra.mxu0 %v252
    %329 = vmatprep.subr.bf16.mxu0 0
    %330 = vmatpush1.bf16.msra.mxu0 %v251
    %331 = vmatprep.subr.bf16.mxu0 0
    %332 = vmatpush2.bf16.msra.mxu0 %v266
    %333 = vmatprep.subr.bf16.mxu0 0
    %334 = vmatpush2.bf16.msra.mxu0 %v265
    %335 = vmatprep.subr.bf16.mxu0 0
    %336 = vmatpush2.bf16.msra.mxu0 %v264
    %337 = vmatprep.subr.bf16.mxu0 0
    %338 = vmatpush2.bf16.msra.mxu0 %v263
    %339 = vmatprep.subr.bf16.mxu0 0
    %340 = vmatpush2.bf16.msra.mxu0 %v262
    %341 = vmatprep.subr.bf16.mxu0 0
    %342 = vmatpush2.bf16.msra.mxu0 %v261
    %343 = vmatprep.subr.bf16.mxu0 0
    %344 = vmatpush2.bf16.msra.mxu0 %v260
    %345 = vmatprep.subr.bf16.mxu0 0
    %346 = vmatpush2.bf16.msra.mxu0 %v259
    %347 = vmatprep.mubr.bf16.mxu0 %v116
    %348 = vmatmul.mubr.bf16.gmra.mxu0 %v109
    %v349 = vpop.f32.mrf.mxu0
    %v350 = vadd.f32 %v92, %v349
    %v351 = vpop.f32.mrf.mxu0
    %v352 = vpop.f32.mrf.mxu0
    %v353 = vpop.f32.mrf.mxu0
    %354 = vdwg.mxu0
    %355 = vmatprep.subr.bf16.mxu0 0
    %356 = vmatpush1.bf16.msra.mxu0 %v274
    %357 = vmatprep.subr.bf16.mxu0 0
    %358 = vmatpush1.bf16.msra.mxu0 %v273
    %359 = vmatprep.subr.bf16.mxu0 0
    %360 = vmatpush1.bf16.msra.mxu0 %v272
    %361 = vmatprep.subr.bf16.mxu0 0
    %362 = vmatpush1.bf16.msra.mxu0 %v271
    %363 = vmatprep.subr.bf16.mxu0 0
    %364 = vmatpush1.bf16.msra.mxu0 %v270
    %365 = vmatprep.subr.bf16.mxu0 0
    %366 = vmatpush1.bf16.msra.mxu0 %v269
    %367 = vmatprep.subr.bf16.mxu0 0
    %368 = vmatpush1.bf16.msra.mxu0 %v268
    %369 = vmatprep.subr.bf16.mxu0 0
    %370 = vmatpush1.bf16.msra.mxu0 %v267
    %371 = vmatprep.subr.bf16.mxu0 0
    %372 = vmatpush2.bf16.msra.mxu0 %v282
    %373 = vmatprep.subr.bf16.mxu0 0
    %374 = vmatpush2.bf16.msra.mxu0 %v281
    %375 = vmatprep.subr.bf16.mxu0 0
    %376 = vmatpush2.bf16.msra.mxu0 %v280
    %377 = vmatprep.subr.bf16.mxu0 0
    %378 = vmatpush2.bf16.msra.mxu0 %v279
    %379 = vmatprep.subr.bf16.mxu0 0
    %380 = vmatpush2.bf16.msra.mxu0 %v278
    %381 = vmatprep.subr.bf16.mxu0 0
    %382 = vmatpush2.bf16.msra.mxu0 %v277
    %383 = vmatprep.subr.bf16.mxu0 0
    %384 = vmatpush2.bf16.msra.mxu0 %v276
    %385 = vmatprep.subr.bf16.mxu0 0
    %386 = vmatpush2.bf16.msra.mxu0 %v275
    %387 = vmatprep.mubr.bf16.mxu0 %v118
    %388 = vmatmul.mubr.bf16.gmra.mxu0 %v117
    %v389 = vpop.f32.mrf.mxu0
    %v390 = vadd.f32 %v350, %v389
    %v391 = vpop.f32.mrf.mxu0
    %v392 = vpop.f32.mrf.mxu0
    %v393 = vpop.f32.mrf.mxu0
    %394 = vdwg.mxu0
    %v395 = vmax.f32 %v390, 0.0
    %v396 = vpack.c.bf16 %v395, %v395
    %v397 = vld [vmem:[%s3] sm:$0xf]
    %v398 = vld [vmem:[%s3 + $0x4] sm:$0xf]
    %v399 = vld [vmem:[%s3 + $0x8] sm:$0xf]
    %v400 = vld [vmem:[%s3 + $0xc] sm:$0xf]
    %v401 = vld [vmem:[%s3 + $0x10] sm:$0xf]
    %v402 = vld [vmem:[%s3 + $0x14] sm:$0xf]
    %v403 = vld [vmem:[%s3 + $0x18] sm:$0xf]
    %v404 = vld [vmem:[%s3 + $0x1c] sm:$0xf]
    %v405 = vld [vmem:[%s4] sm:$0x1]
    %v407 = vlaneseq
    %v408 = vshrl.u32 %v407, 7
    %v409 = vsub.s32 0, %v408
    %v410 = vrot.slane %v405, %v409
    %v420 = vunpack.c.l.b16 %v397
    %v421 = vunpack.c.l.b16 %v398
    %v422 = vunpack.c.l.b16 %v399
    %v423 = vunpack.c.l.b16 %v400
    %v424 = vunpack.c.l.b16 %v401
    %v425 = vunpack.c.l.b16 %v402
    %v426 = vunpack.c.l.b16 %v403
    %v427 = vunpack.c.l.b16 %v404
    %v428 = vpack.c.b16 %v421, %v420
    %v429 = vpack.c.b16 %v423, %v422
    %v430 = vpack.c.b16 %v425, %v424
    %v431 = vpack.c.b16 %v427, %v426
    %vm436 = vcmask 523264
    %v438 = vsel %vm436, %v396, 0
    %440 = vmatprep.subr.bf16.mxu0 0
    %441 = vmatpush1.bf16.msra.mxu0 0
    %442 = vmatprep.subr.bf16.mxu0 0
    %443 = vmatpush1.bf16.msra.mxu0 0
    %444 = vmatprep.subr.bf16.mxu0 0
    %445 = vmatpush1.bf16.msra.mxu0 0
    %446 = vmatprep.subr.bf16.mxu0 0
    %447 = vmatpush1.bf16.msra.mxu0 0
    %448 = vmatprep.subr.bf16.mxu0 0
    %449 = vmatpush1.bf16.msra.mxu0 %v431
    %450 = vmatprep.subr.bf16.mxu0 0
    %451 = vmatpush1.bf16.msra.mxu0 %v430
    %452 = vmatprep.subr.bf16.mxu0 0
    %453 = vmatpush1.bf16.msra.mxu0 %v429
    %454 = vmatprep.subr.bf16.mxu0 0
    %455 = vmatpush1.bf16.msra.mxu0 %v428
    %456 = vmatprep.subr.bf16.mxu0 0
    %457 = vmatpush2.bf16.msra.mxu0 0
    %458 = vmatprep.subr.bf16.mxu0 0
    %459 = vmatpush2.bf16.msra.mxu0 0
    %460 = vmatprep.subr.bf16.mxu0 0
    %461 = vmatpush2.bf16.msra.mxu0 0
    %462 = vmatprep.subr.bf16.mxu0 0
    %463 = vmatpush2.bf16.msra.mxu0 0
    %464 = vmatprep.subr.bf16.mxu0 0
    %465 = vmatpush2.bf16.msra.mxu0 0
    %466 = vmatprep.subr.bf16.mxu0 0
    %467 = vmatpush2.bf16.msra.mxu0 0
    %468 = vmatprep.subr.bf16.mxu0 0
    %469 = vmatpush2.bf16.msra.mxu0 0
    %470 = vmatprep.subr.bf16.mxu0 0
    %471 = vmatpush2.bf16.msra.mxu0 0
    %472 = vmatprep.mubr.bf16.mxu0 0
    %473 = vmatmul.mubr.bf16.gmra.mxu0 %v438
    %v474 = vpop.f32.mrf.mxu0
    %v475 = vadd.f32 %v410, %v474
    %v476 = vpop.f32.mrf.mxu0
    %v477 = vpop.f32.mrf.mxu0
    %v478 = vpop.f32.mrf.mxu0
    %479 = vdwg.mxu0
    %v480 = vmax.f32 %v475, 0.0
    %vm481 = vcmask 123904
    %482 = vst.msk [vmem:[#allocation2] sm:$0x3] %vm481, %v480
    // Predicated region
    $region22: #{mnist_convnet_forward.5} parent=1 // pred_check
      _
    $region23: #{mnist_convnet_forward.5} parent=1 // pred_check_branch
      %484 = sbr.rel (0) target = $region25
    $region24: #{mnist_convnet_forward.5} parent=1 // pred_region
      %s486 = ssub.s32 32, 32
      %487 = vsyncadd [#allocation3], %s486
      %s489 = sshll.u32 [#allocation2], 4
      %s490 = int_to_ptr.vmem [resolvable:$true] %s489
      %492 = dma.vmem_to_hbm [thread:$0]  %s490, 32, %s5, [#allocation3]
    $region25: #{mnist_convnet_forward.5} parent=1 // pred_fallthru
      _
    // Predicated region
    $region26: #{mnist_convnet_forward.5} parent=1 // pred_check
      _
    $region27: #{mnist_convnet_forward.5} parent=1 // pred_check_branch
      %494 = sbr.rel (0) target = $region29
    $region28: #{mnist_convnet_forward.5} parent=1 // pred_region
      %495 = dma.done [#allocation3], 32
    $region29: #{mnist_convnet_forward.5} parent=1 // pred_fallthru
      _
    %496 = vsyncpa [#allocation3], 1

</llo_original>
